<compile_context>
chip_gen: v7x
topology: tpu7x:2x2x1
jax: 0.10.0
libtpu: 0.0.40
codegen_flags: <defaults>
</compile_context>

<pallas_src>
import functools

import jax
import jax.numpy as jnp
import numpy as np
from jax.experimental import pallas as pl
from jax.experimental.pallas import tpu as pltpu


# ---------------------------------------------------------------------------
# Fused kernel: PE add + N encoder blocks, one invocation, everything in VMEM.
# ---------------------------------------------------------------------------
def _fused_encoder_kernel(
    x_ref,        # (B*L, E)        f32   token embeddings (flattened)
    pe_ref,       # (B*L, E)        f32   positional encoding (pre-tiled)
    wqkv_ref,     # (NB, E, QKVP)   bf16  [wq | wk | wv | 0-pad]
    wo_ref,       # (NB, H, hd, E)  bf16  output proj, split per head
    w1_ref,       # (NB, E, FF)     bf16
    w2_ref,       # (NB, FF, E)     bf16
    small_ref,    # (NB, 8, W)      f32   packed biases / LN params
    o_ref,        # (B*L, E)        f32
    *,
    batch,
    seq_len,
    n_heads,
):
    BL, E = x_ref.shape
    FF = w1_ref.shape[2]
    NB = wqkv_ref.shape[0]
    QKVP = wqkv_ref.shape[2]
    H = n_heads
    hd = E // H
    scale = 1.0 / float(np.sqrt(hd))

    def layer_norm(t, gamma, beta):
        mu = jnp.mean(t, axis=-1, keepdims=True)
        var = jnp.mean((t - mu) ** 2, axis=-1, keepdims=True)
        return (t - mu) * jax.lax.rsqrt(var + 1e-5) * gamma + beta

    # Positional-encoding add fused into the kernel (no separate XLA op).
    x = x_ref[...] + pe_ref[...]                                  # (BL, E) f32

    for blk in range(NB):                                         # static unroll
        sm = small_ref[blk]                                       # (8, W) f32
        bqkv = sm[0:1, :QKVP]                                     # packed q|k|v bias (0-padded)
        bo = sm[1:2, :E]
        g1 = sm[2:3, :E]
        be1 = sm[3:4, :E]
        b1 = sm[4:5, :FF]
        b2 = sm[5:6, :E]
        g2 = sm[6:7, :E]
        be2 = sm[7:8, :E]

        # ---- fused Q/K/V projection: one lane-dense matmul per block ----
        xb = x.astype(jnp.bfloat16)                               # bf16 MXU operands
        qkv = jnp.dot(xb, wqkv_ref[blk],
                      preferred_element_type=jnp.float32) + bqkv  # (BL, QKVP) f32

        # (BL, E) -> (B, L, E): clean sublane split; attention batched over B.
        q3 = qkv[:, 0:E].reshape(batch, seq_len, E).astype(jnp.bfloat16)
        k3 = qkv[:, E:2 * E].reshape(batch, seq_len, E).astype(jnp.bfloat16)
        v3 = qkv[:, 2 * E:3 * E].reshape(batch, seq_len, E).astype(jnp.bfloat16)

        # ---- per-head attention + per-head output projection (no concat) ----
        attn = None
        for h in range(H):                                        # static, H = 2
            sl = slice(h * hd, (h + 1) * hd)
            s = jnp.einsum(
                "bld,bmd->blm", q3[..., sl], k3[..., sl],
                preferred_element_type=jnp.float32) * scale       # (B, L, L) f32
            s = s - jnp.max(s, axis=-1, keepdims=True)            # stable softmax (f32)
            p = jnp.exp(s)
            p = p * pl.reciprocal(jnp.sum(p, axis=-1, keepdims=True), approx=True)
            head = jnp.einsum(
                "blm,bmd->bld", p.astype(jnp.bfloat16), v3[..., sl],
                preferred_element_type=jnp.float32)               # (B, L, hd)
            head2 = head.reshape(BL, hd).astype(jnp.bfloat16)
            contrib = jnp.dot(head2, wo_ref[blk, h],
                              preferred_element_type=jnp.float32)  # (BL, E)
            attn = contrib if attn is None else attn + contrib
        attn = attn + bo

        # ---- residual + LN1 (f32) ----
        y = layer_norm(x + attn, g1, be1)

        # ---- feed forward (ReLU), FF = 128 -> lane-dense intermediate ----
        h1 = jnp.dot(y.astype(jnp.bfloat16), w1_ref[blk],
                     preferred_element_type=jnp.float32) + b1
        h1 = jnp.maximum(h1, 0.0)
        ff = jnp.dot(h1.astype(jnp.bfloat16), w2_ref[blk],
                     preferred_element_type=jnp.float32) + b2

        # ---- residual + LN2 (f32) ----
        x = layer_norm(y + ff, g2, be2)

    o_ref[...] = x.astype(o_ref.dtype)


def _fused_encoder_call(x_flat, pe_flat, packed, *, n_heads, batch, seq_len):
    BL, E = x_flat.shape
    kernel = functools.partial(
        _fused_encoder_kernel, batch=batch, seq_len=seq_len, n_heads=n_heads)
    n_inputs = 7
    return pl.pallas_call(
        kernel,
        out_shape=jax.ShapeDtypeStruct((BL, E), jnp.float32),
        # No grid: single invocation, whole arrays resident in VMEM (<100 KiB total).
        in_specs=[pl.BlockSpec(memory_space=pltpu.MemorySpace.VMEM)] * n_inputs,
        out_specs=pl.BlockSpec(memory_space=pltpu.MemorySpace.VMEM),
        # Explicit VMEM budget (guardrail for v7x's 64 MiB when shapes grow).
        compiler_params=pltpu.CompilerParams(vmem_limit_bytes=32 * 1024 * 1024),
    )(
        x_flat, pe_flat,
        packed["wqkv"], packed["wo_h"], packed["w1"], packed["w2"],
        packed["small"],
    )


# ---------------------------------------------------------------------------
# Jitted forward: everything on device; PE table passed in (built once).
# ---------------------------------------------------------------------------
@functools.partial(jax.jit, static_argnames=("n_heads",))
def transformer_classifier_forward(batch_embedding, pe_flat, packed, *, n_heads):
    """Forward of TransformerClassifier: one fused Pallas kernel call."""
    B, L, E = batch_embedding.shape
    x_flat = batch_embedding.reshape(B * L, E)                   # free metadata reshape
    out = _fused_encoder_call(x_flat, pe_flat, packed,
                              n_heads=n_heads, batch=B, seq_len=L)
    return out.reshape(B, L, E)


# ---------------------------------------------------------------------------
# Host-side glue: PE table, synthetic params, packing into kernel layout.
# ---------------------------------------------------------------------------
def sinusoidal_pos_encoding(max_len, embedding_num):
    pos = np.arange(max_len)[:, None].astype(np.float32)
    i = np.arange(embedding_num)[None, :].astype(np.float32)
    angle = pos / np.power(10000.0, (2.0 * (i // 2)) / embedding_num)
    pe = np.zeros((max_len, embedding_num), dtype=np.float32)
    pe[:, 0::2] = np.sin(angle[:, 0::2])
    pe[:, 1::2] = np.cos(angle[:, 1::2])
    return pe


def make_pe_flat(batch, max_len, embedding_num):
    """Built ONCE per shape and reused; lives on device after first transfer."""
    pe = sinusoidal_pos_encoding(max_len, embedding_num)
    return jnp.asarray(np.tile(pe, (batch, 1)), jnp.float32)     # (B*L, E)


def init_params(key, block_nums, embedding_num, ff_num):
    """Deterministic synthetic init (small normals, zero biases, LN gamma=1)."""
    blocks = []
    E, FF = embedding_num, ff_num
    std = 0.02
    for _ in range(block_nums):
        keys = jax.random.split(key, 7)
        key = keys[0]
        blocks.append({
            "wq": jax.random.normal(keys[1], (E, E), jnp.float32) * std,
            "wk": jax.random.normal(keys[2], (E, E), jnp.float32) * std,
            "wv": jax.random.normal(keys[3], (E, E), jnp.float32) * std,
            "wo": jax.random.normal(keys[4], (E, E), jnp.float32) * std,
            "bq": jnp.zeros((E,), jnp.float32),
            "bk": jnp.zeros((E,), jnp.float32),
            "bv": jnp.zeros((E,), jnp.float32),
            "bo": jnp.zeros((E,), jnp.float32),
            "w1": jax.random.normal(keys[5], (E, FF), jnp.float32) * std,
            "b1": jnp.zeros((FF,), jnp.float32),
            "w2": jax.random.normal(keys[6], (FF, E), jnp.float32) * std,
            "b2": jnp.zeros((E,), jnp.float32),
            "ln1_g": jnp.ones((E,), jnp.float32),
            "ln1_b": jnp.zeros((E,), jnp.float32),
            "ln2_g": jnp.ones((E,), jnp.float32),
            "ln2_b": jnp.zeros((E,), jnp.float32),
        })
    return blocks


def pack_params(blocks, embedding_num, ff_num, n_heads):
    """One-time packing into kernel layout.

    * wq|wk|wv fused into one (NB, E, QKVP) bf16 slab (3E padded to 128 lanes).
    * wo split per head into (NB, H, hd, E) bf16.
    * w1/w2 stacked bf16; small biases / LN params packed into (NB, 8, W) f32.
    """
    E, FF = embedding_num, ff_num
    H = n_heads
    hd = E // H
    QKV = 3 * E
    QKVP = ((QKV + 127) // 128) * 128                 # lane-dense fused QKV width
    W = max(E, FF, QKVP)

    def pad_row(v):
        v = np.asarray(v, np.float32).reshape(-1)
        row = np.zeros((W,), np.float32)
        row[:v.shape[0]] = v
        return row

    wqkv = []
    small = []
    for b in blocks:
        m = np.concatenate(
            [np.asarray(b["wq"]), np.asarray(b["wk"]), np.asarray(b["wv"])],
            axis=1)                                   # (E, 3E)
        mp = np.zeros((E, QKVP), np.float32)
        mp[:, :QKV] = m
        wqkv.append(mp)
        small.append(np.stack([
            pad_row(np.concatenate(
                [np.asarray(b["bq"]), np.asarray(b["bk"]), np.asarray(b["bv"])])),
            pad_row(b["bo"]),
            pad_row(b["ln1_g"]), pad_row(b["ln1_b"]),
            pad_row(b["b1"]), pad_row(b["b2"]),
            pad_row(b["ln2_g"]), pad_row(b["ln2_b"]),
        ]))

    return {
        "wqkv": jnp.asarray(np.stack(wqkv), jnp.bfloat16),                 # (NB, E, QKVP)
        "wo_h": jnp.stack([b["wo"].reshape(H, hd, E) for b in blocks]      # (NB, H, hd, E)
                          ).astype(jnp.bfloat16),
        "w1": jnp.stack([b["w1"] for b in blocks]).astype(jnp.bfloat16),   # (NB, E, FF)
        "w2": jnp.stack([b["w2"] for b in blocks]).astype(jnp.bfloat16),   # (NB, FF, E)
        "small": jnp.asarray(np.stack(small), jnp.float32),                # (NB, 8, W)
    }


# ---------------------------------------------------------------------------
# Pure-JAX reference (for a loose numerical sanity check).
# ---------------------------------------------------------------------------
def _reference_forward(batch_embedding, blocks, *, n_heads):
    B, L, E = batch_embedding.shape
    H, hd = n_heads, E // n_heads
    x = batch_embedding + jnp.asarray(sinusoidal_pos_encoding(L, E))[None]

    def ln(t, g, b):
        mu = jnp.mean(t, -1, keepdims=True)
        var = jnp.mean((t - mu) ** 2, -1, keepdims=True)
        return (t - mu) * jax.lax.rsqrt(var + 1e-5) * g + b

    for p in blocks:
        q = x @ p["wq"] + p["bq"]
        k = x @ p["wk"] + p["bk"]
        v = x @ p["wv"] + p["bv"]
        split = lambda t: t.reshape(B, L, H, hd).transpose(0, 2, 1, 3)
        s = jnp.einsum("bhld,bhmd->bhlm", split(q), split(k)) / np.sqrt(hd)
        pw = jax.nn.softmax(s, axis=-1)
        o = jnp.einsum("bhlm,bhmd->bhld", pw, split(v))
        o = o.transpose(0, 2, 1, 3).reshape(B, L, E)
        attn = o @ p["wo"] + p["bo"]
        y = ln(x + attn, p["ln1_g"], p["ln1_b"])
        ff = jnp.maximum(y @ p["w1"] + p["b1"], 0.0) @ p["w2"] + p["b2"]
        x = ln(y + ff, p["ln2_g"], p["ln2_b"])
    return x


if __name__ == "__main__":
    batch = 2
    max_len = 8
    embedding_num = 32
    n_heads = 2
    ff_num = 128
    block_nums = 2

    key = jax.random.PRNGKey(0)
    k_x, k_p = jax.random.split(key)
    batch_embedding = jax.random.normal(
        k_x, (batch, max_len, embedding_num), jnp.float32)

    blocks = init_params(k_p, block_nums, embedding_num, ff_num)
    packed = pack_params(blocks, embedding_num, ff_num, n_heads)
    pe_flat = make_pe_flat(batch, max_len, embedding_num)   # built once, reused

    out = transformer_classifier_forward(
        batch_embedding, pe_flat, packed, n_heads=n_heads)
    out = jax.block_until_ready(out)

    assert out.shape == (batch, max_len, embedding_num)
    assert bool(jnp.all(jnp.isfinite(out)))

    # Loose check vs. f32 reference (kernel uses bf16 matmul operands + approx
    # reciprocal in the softmax denominator; rows sum to 1 only to ~1e-3).
    ref = _reference_forward(batch_embedding, blocks, n_heads=n_heads)
    max_err = float(jnp.max(jnp.abs(out - ref)))
    assert max_err < 5e-2, f"max abs error vs reference: {max_err}"

    print("KERNEL_OK")
</pallas_src>

<mosaic_0001>
module attributes {stable_mosaic.version = 11 : i64} {
  func.func @_fused_encoder_kernel(%arg0: memref<16x32xf32, #tpu.memory_space<vmem>>, %arg1: memref<16x32xf32, #tpu.memory_space<vmem>>, %arg2: memref<2x32x128xbf16, #tpu.memory_space<vmem>>, %arg3: memref<2x2x16x32xbf16, #tpu.memory_space<vmem>>, %arg4: memref<2x32x128xbf16, #tpu.memory_space<vmem>>, %arg5: memref<2x128x32xbf16, #tpu.memory_space<vmem>>, %arg6: memref<2x8x128xf32, #tpu.memory_space<vmem>>, %arg7: memref<16x32xf32, #tpu.memory_space<vmem>>) attributes {dimension_semantics = [], scalar_prefetch = 0 : i64, scratch_operands = 0 : i64, tpu.core_type = #tpu.core_type<tc>} {
    %c0 = arith.constant 0 : index
    %c0_0 = arith.constant 0 : index
    %0 = vector.load %arg0[%c0, %c0_0] : memref<16x32xf32, #tpu.memory_space<vmem>>, vector<16x32xf32>
    %c0_1 = arith.constant 0 : index
    %c0_2 = arith.constant 0 : index
    %1 = vector.load %arg1[%c0_1, %c0_2] : memref<16x32xf32, #tpu.memory_space<vmem>>, vector<16x32xf32>
    %2 = arith.addf %0, %1 : vector<16x32xf32>
    %c0_3 = arith.constant 0 : index
    %c0_4 = arith.constant 0 : index
    %c0_5 = arith.constant 0 : index
    %3 = vector.load %arg6[%c0_3, %c0_4, %c0_5] : memref<2x8x128xf32, #tpu.memory_space<vmem>>, vector<1x8x128xf32>
    %4 = vector.shape_cast %3 : vector<1x8x128xf32> to vector<8x128xf32>
    %5 = vector.extract_strided_slice %4 {offsets = [0, 0], sizes = [1, 128], strides = [1, 1]} : vector<8x128xf32> to vector<1x128xf32>
    %6 = vector.extract_strided_slice %4 {offsets = [1, 0], sizes = [1, 32], strides = [1, 1]} : vector<8x128xf32> to vector<1x32xf32>
    %7 = vector.extract_strided_slice %4 {offsets = [2, 0], sizes = [1, 32], strides = [1, 1]} : vector<8x128xf32> to vector<1x32xf32>
    %8 = vector.extract_strided_slice %4 {offsets = [3, 0], sizes = [1, 32], strides = [1, 1]} : vector<8x128xf32> to vector<1x32xf32>
    %9 = vector.extract_strided_slice %4 {offsets = [4, 0], sizes = [1, 128], strides = [1, 1]} : vector<8x128xf32> to vector<1x128xf32>
    %10 = vector.extract_strided_slice %4 {offsets = [5, 0], sizes = [1, 32], strides = [1, 1]} : vector<8x128xf32> to vector<1x32xf32>
    %11 = vector.extract_strided_slice %4 {offsets = [6, 0], sizes = [1, 32], strides = [1, 1]} : vector<8x128xf32> to vector<1x32xf32>
    %12 = vector.extract_strided_slice %4 {offsets = [7, 0], sizes = [1, 32], strides = [1, 1]} : vector<8x128xf32> to vector<1x32xf32>
    %13 = arith.truncf %2 : vector<16x32xf32> to vector<16x32xbf16>
    %c0_6 = arith.constant 0 : index
    %c0_7 = arith.constant 0 : index
    %c0_8 = arith.constant 0 : index
    %14 = vector.load %arg2[%c0_6, %c0_7, %c0_8] : memref<2x32x128xbf16, #tpu.memory_space<vmem>>, vector<1x32x128xbf16>
    %15 = vector.shape_cast %14 : vector<1x32x128xbf16> to vector<32x128xbf16>
    %cst = arith.constant dense<0.000000e+00> : vector<16x128xf32>
    %16 = tpu.matmul %13, %15, %cst {dimension_numbers = #tpu.dot_dimension_numbers<[1], [0], [0], [1], [0, 0, 1, 1], [], []>} : vector<16x32xbf16>, vector<32x128xbf16>, vector<16x128xf32> -> vector<16x128xf32>
    %17 = vector.broadcast %5 : vector<1x128xf32> to vector<16x128xf32>
    %18 = arith.addf %16, %17 : vector<16x128xf32>
    %19 = vector.extract_strided_slice %18 {offsets = [0, 0], sizes = [16, 32], strides = [1, 1]} : vector<16x128xf32> to vector<16x32xf32>
    %20 = vector.shape_cast %19 : vector<16x32xf32> to vector<2x8x32xf32>
    %21 = arith.truncf %20 : vector<2x8x32xf32> to vector<2x8x32xbf16>
    %22 = vector.extract_strided_slice %18 {offsets = [0, 32], sizes = [16, 32], strides = [1, 1]} : vector<16x128xf32> to vector<16x32xf32>
    %23 = vector.shape_cast %22 : vector<16x32xf32> to vector<2x8x32xf32>
    %24 = arith.truncf %23 : vector<2x8x32xf32> to vector<2x8x32xbf16>
    %25 = vector.extract_strided_slice %18 {offsets = [0, 64], sizes = [16, 32], strides = [1, 1]} : vector<16x128xf32> to vector<16x32xf32>
    %26 = vector.shape_cast %25 : vector<16x32xf32> to vector<2x8x32xf32>
    %27 = arith.truncf %26 : vector<2x8x32xf32> to vector<2x8x32xbf16>
    %28 = vector.extract_strided_slice %21 {offsets = [0, 0, 0], sizes = [2, 8, 16], strides = [1, 1, 1]} : vector<2x8x32xbf16> to vector<2x8x16xbf16>
    %29 = vector.extract_strided_slice %24 {offsets = [0, 0, 0], sizes = [2, 8, 16], strides = [1, 1, 1]} : vector<2x8x32xbf16> to vector<2x8x16xbf16>
    "tpu.trace_start"() <{level = 10 : i32, message = "bld,bmd->blm"}> : () -> ()
    %cst_9 = arith.constant dense<0.000000e+00> : vector<2x8x8xf32>
    %30 = tpu.matmul %28, %29, %cst_9 {dimension_numbers = #tpu.dot_dimension_numbers<[2], [2], [1], [1], [0, 0, 0, 1, 1, 1], [0], [0]>} : vector<2x8x16xbf16>, vector<2x8x16xbf16>, vector<2x8x8xf32> -> vector<2x8x8xf32>
    "tpu.trace_stop"() : () -> ()
    %cst_10 = arith.constant 2.500000e-01 : f32
    %31 = vector.broadcast %cst_10 : f32 to vector<2x8x8xf32>
    %32 = arith.mulf %30, %31 : vector<2x8x8xf32>
    %cst_11 = arith.constant dense<0xFF800000> : vector<2x8xf32>
    %33 = vector.multi_reduction <maximumf>, %32, %cst_11 [2] : vector<2x8x8xf32> to vector<2x8xf32>
    %34 = vector.shape_cast %33 : vector<2x8xf32> to vector<2x8x1xf32>
    %35 = vector.broadcast %34 : vector<2x8x1xf32> to vector<2x8x8xf32>
    %36 = arith.subf %32, %35 : vector<2x8x8xf32>
    %37 = math.exp %36 : vector<2x8x8xf32>
    %cst_12 = arith.constant dense<0.000000e+00> : vector<2x8xf32>
    %38 = vector.multi_reduction <add>, %37, %cst_12 [2] : vector<2x8x8xf32> to vector<2x8xf32>
    %39 = vector.shape_cast %38 : vector<2x8xf32> to vector<2x8x1xf32>
    %40 = tpu.reciprocal %39 {approx = true} : vector<2x8x1xf32> -> vector<2x8x1xf32>
    %41 = vector.broadcast %40 : vector<2x8x1xf32> to vector<2x8x8xf32>
    %42 = arith.mulf %37, %41 : vector<2x8x8xf32>
    %43 = arith.truncf %42 : vector<2x8x8xf32> to vector<2x8x8xbf16>
    %44 = vector.extract_strided_slice %27 {offsets = [0, 0, 0], sizes = [2, 8, 16], strides = [1, 1, 1]} : vector<2x8x32xbf16> to vector<2x8x16xbf16>
    "tpu.trace_start"() <{level = 10 : i32, message = "blm,bmd->bld"}> : () -> ()
    %cst_13 = arith.constant dense<0.000000e+00> : vector<2x8x16xf32>
    %45 = tpu.matmul %43, %44, %cst_13 {dimension_numbers = #tpu.dot_dimension_numbers<[2], [1], [1], [2], [0, 0, 0, 1, 1, 2], [0], [0]>} : vector<2x8x8xbf16>, vector<2x8x16xbf16>, vector<2x8x16xf32> -> vector<2x8x16xf32>
    "tpu.trace_stop"() : () -> ()
    %46 = vector.shape_cast %45 : vector<2x8x16xf32> to vector<16x16xf32>
    %47 = arith.truncf %46 : vector<16x16xf32> to vector<16x16xbf16>
    %c0_14 = arith.constant 0 : index
    %c0_15 = arith.constant 0 : index
    %c0_16 = arith.constant 0 : index
    %c0_17 = arith.constant 0 : index
    %48 = vector.load %arg3[%c0_14, %c0_15, %c0_16, %c0_17] : memref<2x2x16x32xbf16, #tpu.memory_space<vmem>>, vector<1x1x16x32xbf16>
    %49 = vector.shape_cast %48 : vector<1x1x16x32xbf16> to vector<16x32xbf16>
    %cst_18 = arith.constant dense<0.000000e+00> : vector<16x32xf32>
    %50 = tpu.matmul %47, %49, %cst_18 {dimension_numbers = #tpu.dot_dimension_numbers<[1], [0], [0], [1], [0, 0, 1, 1], [], []>} : vector<16x16xbf16>, vector<16x32xbf16>, vector<16x32xf32> -> vector<16x32xf32>
    %51 = vector.extract_strided_slice %21 {offsets = [0, 0, 16], sizes = [2, 8, 16], strides = [1, 1, 1]} : vector<2x8x32xbf16> to vector<2x8x16xbf16>
    %52 = vector.extract_strided_slice %24 {offsets = [0, 0, 16], sizes = [2, 8, 16], strides = [1, 1, 1]} : vector<2x8x32xbf16> to vector<2x8x16xbf16>
    "tpu.trace_start"() <{level = 10 : i32, message = "bld,bmd->blm"}> : () -> ()
    %cst_19 = arith.constant dense<0.000000e+00> : vector<2x8x8xf32>
    %53 = tpu.matmul %51, %52, %cst_19 {dimension_numbers = #tpu.dot_dimension_numbers<[2], [2], [1], [1], [0, 0, 0, 1, 1, 1], [0], [0]>} : vector<2x8x16xbf16>, vector<2x8x16xbf16>, vector<2x8x8xf32> -> vector<2x8x8xf32>
    "tpu.trace_stop"() : () -> ()
    %cst_20 = arith.constant 2.500000e-01 : f32
    %54 = vector.broadcast %cst_20 : f32 to vector<2x8x8xf32>
    %55 = arith.mulf %53, %54 : vector<2x8x8xf32>
    %cst_21 = arith.constant dense<0xFF800000> : vector<2x8xf32>
    %56 = vector.multi_reduction <maximumf>, %55, %cst_21 [2] : vector<2x8x8xf32> to vector<2x8xf32>
    %57 = vector.shape_cast %56 : vector<2x8xf32> to vector<2x8x1xf32>
    %58 = vector.broadcast %57 : vector<2x8x1xf32> to vector<2x8x8xf32>
    %59 = arith.subf %55, %58 : vector<2x8x8xf32>
    %60 = math.exp %59 : vector<2x8x8xf32>
    %cst_22 = arith.constant dense<0.000000e+00> : vector<2x8xf32>
    %61 = vector.multi_reduction <add>, %60, %cst_22 [2] : vector<2x8x8xf32> to vector<2x8xf32>
    %62 = vector.shape_cast %61 : vector<2x8xf32> to vector<2x8x1xf32>
    %63 = tpu.reciprocal %62 {approx = true} : vector<2x8x1xf32> -> vector<2x8x1xf32>
    %64 = vector.broadcast %63 : vector<2x8x1xf32> to vector<2x8x8xf32>
    %65 = arith.mulf %60, %64 : vector<2x8x8xf32>
    %66 = arith.truncf %65 : vector<2x8x8xf32> to vector<2x8x8xbf16>
    %67 = vector.extract_strided_slice %27 {offsets = [0, 0, 16], sizes = [2, 8, 16], strides = [1, 1, 1]} : vector<2x8x32xbf16> to vector<2x8x16xbf16>
    "tpu.trace_start"() <{level = 10 : i32, message = "blm,bmd->bld"}> : () -> ()
    %cst_23 = arith.constant dense<0.000000e+00> : vector<2x8x16xf32>
    %68 = tpu.matmul %66, %67, %cst_23 {dimension_numbers = #tpu.dot_dimension_numbers<[2], [1], [1], [2], [0, 0, 0, 1, 1, 2], [0], [0]>} : vector<2x8x8xbf16>, vector<2x8x16xbf16>, vector<2x8x16xf32> -> vector<2x8x16xf32>
    "tpu.trace_stop"() : () -> ()
    %69 = vector.shape_cast %68 : vector<2x8x16xf32> to vector<16x16xf32>
    %70 = arith.truncf %69 : vector<16x16xf32> to vector<16x16xbf16>
    %c0_24 = arith.constant 0 : index
    %c1 = arith.constant 1 : index
    %c0_25 = arith.constant 0 : index
    %c0_26 = arith.constant 0 : index
    %71 = vector.load %arg3[%c0_24, %c1, %c0_25, %c0_26] : memref<2x2x16x32xbf16, #tpu.memory_space<vmem>>, vector<1x1x16x32xbf16>
    %72 = vector.shape_cast %71 : vector<1x1x16x32xbf16> to vector<16x32xbf16>
    %cst_27 = arith.constant dense<0.000000e+00> : vector<16x32xf32>
    %73 = tpu.matmul %70, %72, %cst_27 {dimension_numbers = #tpu.dot_dimension_numbers<[1], [0], [0], [1], [0, 0, 1, 1], [], []>} : vector<16x16xbf16>, vector<16x32xbf16>, vector<16x32xf32> -> vector<16x32xf32>
    %74 = arith.addf %50, %73 : vector<16x32xf32>
    %75 = vector.broadcast %6 : vector<1x32xf32> to vector<16x32xf32>
    %76 = arith.addf %74, %75 : vector<16x32xf32>
    %77 = arith.addf %2, %76 : vector<16x32xf32>
    %cst_28 = arith.constant dense<0.000000e+00> : vector<16xf32>
    %78 = vector.multi_reduction <add>, %77, %cst_28 [1] : vector<16x32xf32> to vector<16xf32>
    %79 = vector.shape_cast %78 : vector<16xf32> to vector<16x1xf32>
    %cst_29 = arith.constant 3.200000e+01 : f32
    %80 = vector.broadcast %cst_29 : f32 to vector<16x1xf32>
    %81 = arith.divf %79, %80 : vector<16x1xf32>
    %82 = vector.broadcast %81 : vector<16x1xf32> to vector<16x32xf32>
    %83 = arith.subf %77, %82 : vector<16x32xf32>
    %84 = arith.mulf %83, %83 : vector<16x32xf32>
    %cst_30 = arith.constant dense<0.000000e+00> : vector<16xf32>
    %85 = vector.multi_reduction <add>, %84, %cst_30 [1] : vector<16x32xf32> to vector<16xf32>
    %86 = vector.shape_cast %85 : vector<16xf32> to vector<16x1xf32>
    %cst_31 = arith.constant 3.200000e+01 : f32
    %87 = vector.broadcast %cst_31 : f32 to vector<16x1xf32>
    %88 = arith.divf %86, %87 : vector<16x1xf32>
    %89 = vector.broadcast %81 : vector<16x1xf32> to vector<16x32xf32>
    %90 = arith.subf %77, %89 : vector<16x32xf32>
    %cst_32 = arith.constant 9.99999974E-6 : f32
    %91 = vector.broadcast %cst_32 : f32 to vector<16x1xf32>
    %92 = arith.addf %88, %91 : vector<16x1xf32>
    %93 = math.rsqrt %92 : vector<16x1xf32>
    %94 = vector.broadcast %93 : vector<16x1xf32> to vector<16x32xf32>
    %95 = arith.mulf %90, %94 : vector<16x32xf32>
    %96 = vector.broadcast %7 : vector<1x32xf32> to vector<16x32xf32>
    %97 = arith.mulf %95, %96 : vector<16x32xf32>
    %98 = vector.broadcast %8 : vector<1x32xf32> to vector<16x32xf32>
    %99 = arith.addf %97, %98 : vector<16x32xf32>
    %100 = arith.truncf %99 : vector<16x32xf32> to vector<16x32xbf16>
    %c0_33 = arith.constant 0 : index
    %c0_34 = arith.constant 0 : index
    %c0_35 = arith.constant 0 : index
    %101 = vector.load %arg4[%c0_33, %c0_34, %c0_35] : memref<2x32x128xbf16, #tpu.memory_space<vmem>>, vector<1x32x128xbf16>
    %102 = vector.shape_cast %101 : vector<1x32x128xbf16> to vector<32x128xbf16>
    %cst_36 = arith.constant dense<0.000000e+00> : vector<16x128xf32>
    %103 = tpu.matmul %100, %102, %cst_36 {dimension_numbers = #tpu.dot_dimension_numbers<[1], [0], [0], [1], [0, 0, 1, 1], [], []>} : vector<16x32xbf16>, vector<32x128xbf16>, vector<16x128xf32> -> vector<16x128xf32>
    %104 = vector.broadcast %9 : vector<1x128xf32> to vector<16x128xf32>
    %105 = arith.addf %103, %104 : vector<16x128xf32>
    %cst_37 = arith.constant 0.000000e+00 : f32
    %106 = vector.broadcast %cst_37 : f32 to vector<16x128xf32>
    %107 = arith.maximumf %105, %106 : vector<16x128xf32>
    %108 = arith.truncf %107 : vector<16x128xf32> to vector<16x128xbf16>
    %c0_38 = arith.constant 0 : index
    %c0_39 = arith.constant 0 : index
    %c0_40 = arith.constant 0 : index
    %109 = vector.load %arg5[%c0_38, %c0_39, %c0_40] : memref<2x128x32xbf16, #tpu.memory_space<vmem>>, vector<1x128x32xbf16>
    %110 = vector.shape_cast %109 : vector<1x128x32xbf16> to vector<128x32xbf16>
    %cst_41 = arith.constant dense<0.000000e+00> : vector<16x32xf32>
    %111 = tpu.matmul %108, %110, %cst_41 {dimension_numbers = #tpu.dot_dimension_numbers<[1], [0], [0], [1], [0, 0, 1, 1], [], []>} : vector<16x128xbf16>, vector<128x32xbf16>, vector<16x32xf32> -> vector<16x32xf32>
    %112 = vector.broadcast %10 : vector<1x32xf32> to vector<16x32xf32>
    %113 = arith.addf %111, %112 : vector<16x32xf32>
    %114 = arith.addf %99, %113 : vector<16x32xf32>
    %cst_42 = arith.constant dense<0.000000e+00> : vector<16xf32>
    %115 = vector.multi_reduction <add>, %114, %cst_42 [1] : vector<16x32xf32> to vector<16xf32>
    %116 = vector.shape_cast %115 : vector<16xf32> to vector<16x1xf32>
    %cst_43 = arith.constant 3.200000e+01 : f32
    %117 = vector.broadcast %cst_43 : f32 to vector<16x1xf32>
    %118 = arith.divf %116, %117 : vector<16x1xf32>
    %119 = vector.broadcast %118 : vector<16x1xf32> to vector<16x32xf32>
    %120 = arith.subf %114, %119 : vector<16x32xf32>
    %121 = arith.mulf %120, %120 : vector<16x32xf32>
    %cst_44 = arith.constant dense<0.000000e+00> : vector<16xf32>
    %122 = vector.multi_reduction <add>, %121, %cst_44 [1] : vector<16x32xf32> to vector<16xf32>
    %123 = vector.shape_cast %122 : vector<16xf32> to vector<16x1xf32>
    %cst_45 = arith.constant 3.200000e+01 : f32
    %124 = vector.broadcast %cst_45 : f32 to vector<16x1xf32>
    %125 = arith.divf %123, %124 : vector<16x1xf32>
    %126 = vector.broadcast %118 : vector<16x1xf32> to vector<16x32xf32>
    %127 = arith.subf %114, %126 : vector<16x32xf32>
    %cst_46 = arith.constant 9.99999974E-6 : f32
    %128 = vector.broadcast %cst_46 : f32 to vector<16x1xf32>
    %129 = arith.addf %125, %128 : vector<16x1xf32>
    %130 = math.rsqrt %129 : vector<16x1xf32>
    %131 = vector.broadcast %130 : vector<16x1xf32> to vector<16x32xf32>
    %132 = arith.mulf %127, %131 : vector<16x32xf32>
    %133 = vector.broadcast %11 : vector<1x32xf32> to vector<16x32xf32>
    %134 = arith.mulf %132, %133 : vector<16x32xf32>
    %135 = vector.broadcast %12 : vector<1x32xf32> to vector<16x32xf32>
    %136 = arith.addf %134, %135 : vector<16x32xf32>
    %c1_47 = arith.constant 1 : index
    %c0_48 = arith.constant 0 : index
    %c0_49 = arith.constant 0 : index
    %137 = vector.load %arg6[%c1_47, %c0_48, %c0_49] : memref<2x8x128xf32, #tpu.memory_space<vmem>>, vector<1x8x128xf32>
    %138 = vector.shape_cast %137 : vector<1x8x128xf32> to vector<8x128xf32>
    %139 = vector.extract_strided_slice %138 {offsets = [0, 0], sizes = [1, 128], strides = [1, 1]} : vector<8x128xf32> to vector<1x128xf32>
    %140 = vector.extract_strided_slice %138 {offsets = [1, 0], sizes = [1, 32], strides = [1, 1]} : vector<8x128xf32> to vector<1x32xf32>
    %141 = vector.extract_strided_slice %138 {offsets = [2, 0], sizes = [1, 32], strides = [1, 1]} : vector<8x128xf32> to vector<1x32xf32>
    %142 = vector.extract_strided_slice %138 {offsets = [3, 0], sizes = [1, 32], strides = [1, 1]} : vector<8x128xf32> to vector<1x32xf32>
    %143 = vector.extract_strided_slice %138 {offsets = [4, 0], sizes = [1, 128], strides = [1, 1]} : vector<8x128xf32> to vector<1x128xf32>
    %144 = vector.extract_strided_slice %138 {offsets = [5, 0], sizes = [1, 32], strides = [1, 1]} : vector<8x128xf32> to vector<1x32xf32>
    %145 = vector.extract_strided_slice %138 {offsets = [6, 0], sizes = [1, 32], strides = [1, 1]} : vector<8x128xf32> to vector<1x32xf32>
    %146 = vector.extract_strided_slice %138 {offsets = [7, 0], sizes = [1, 32], strides = [1, 1]} : vector<8x128xf32> to vector<1x32xf32>
    %147 = arith.truncf %136 : vector<16x32xf32> to vector<16x32xbf16>
    %c1_50 = arith.constant 1 : index
    %c0_51 = arith.constant 0 : index
    %c0_52 = arith.constant 0 : index
    %148 = vector.load %arg2[%c1_50, %c0_51, %c0_52] : memref<2x32x128xbf16, #tpu.memory_space<vmem>>, vector<1x32x128xbf16>
    %149 = vector.shape_cast %148 : vector<1x32x128xbf16> to vector<32x128xbf16>
    %cst_53 = arith.constant dense<0.000000e+00> : vector<16x128xf32>
    %150 = tpu.matmul %147, %149, %cst_53 {dimension_numbers = #tpu.dot_dimension_numbers<[1], [0], [0], [1], [0, 0, 1, 1], [], []>} : vector<16x32xbf16>, vector<32x128xbf16>, vector<16x128xf32> -> vector<16x128xf32>
    %151 = vector.broadcast %139 : vector<1x128xf32> to vector<16x128xf32>
    %152 = arith.addf %150, %151 : vector<16x128xf32>
    %153 = vector.extract_strided_slice %152 {offsets = [0, 0], sizes = [16, 32], strides = [1, 1]} : vector<16x128xf32> to vector<16x32xf32>
    %154 = vector.shape_cast %153 : vector<16x32xf32> to vector<2x8x32xf32>
    %155 = arith.truncf %154 : vector<2x8x32xf32> to vector<2x8x32xbf16>
    %156 = vector.extract_strided_slice %152 {offsets = [0, 32], sizes = [16, 32], strides = [1, 1]} : vector<16x128xf32> to vector<16x32xf32>
    %157 = vector.shape_cast %156 : vector<16x32xf32> to vector<2x8x32xf32>
    %158 = arith.truncf %157 : vector<2x8x32xf32> to vector<2x8x32xbf16>
    %159 = vector.extract_strided_slice %152 {offsets = [0, 64], sizes = [16, 32], strides = [1, 1]} : vector<16x128xf32> to vector<16x32xf32>
    %160 = vector.shape_cast %159 : vector<16x32xf32> to vector<2x8x32xf32>
    %161 = arith.truncf %160 : vector<2x8x32xf32> to vector<2x8x32xbf16>
    %162 = vector.extract_strided_slice %155 {offsets = [0, 0, 0], sizes = [2, 8, 16], strides = [1, 1, 1]} : vector<2x8x32xbf16> to vector<2x8x16xbf16>
    %163 = vector.extract_strided_slice %158 {offsets = [0, 0, 0], sizes = [2, 8, 16], strides = [1, 1, 1]} : vector<2x8x32xbf16> to vector<2x8x16xbf16>
    "tpu.trace_start"() <{level = 10 : i32, message = "bld,bmd->blm"}> : () -> ()
    %cst_54 = arith.constant dense<0.000000e+00> : vector<2x8x8xf32>
    %164 = tpu.matmul %162, %163, %cst_54 {dimension_numbers = #tpu.dot_dimension_numbers<[2], [2], [1], [1], [0, 0, 0, 1, 1, 1], [0], [0]>} : vector<2x8x16xbf16>, vector<2x8x16xbf16>, vector<2x8x8xf32> -> vector<2x8x8xf32>
    "tpu.trace_stop"() : () -> ()
    %cst_55 = arith.constant 2.500000e-01 : f32
    %165 = vector.broadcast %cst_55 : f32 to vector<2x8x8xf32>
    %166 = arith.mulf %164, %165 : vector<2x8x8xf32>
    %cst_56 = arith.constant dense<0xFF800000> : vector<2x8xf32>
    %167 = vector.multi_reduction <maximumf>, %166, %cst_56 [2] : vector<2x8x8xf32> to vector<2x8xf32>
    %168 = vector.shape_cast %167 : vector<2x8xf32> to vector<2x8x1xf32>
    %169 = vector.broadcast %168 : vector<2x8x1xf32> to vector<2x8x8xf32>
    %170 = arith.subf %166, %169 : vector<2x8x8xf32>
    %171 = math.exp %170 : vector<2x8x8xf32>
    %cst_57 = arith.constant dense<0.000000e+00> : vector<2x8xf32>
    %172 = vector.multi_reduction <add>, %171, %cst_57 [2] : vector<2x8x8xf32> to vector<2x8xf32>
    %173 = vector.shape_cast %172 : vector<2x8xf32> to vector<2x8x1xf32>
    %174 = tpu.reciprocal %173 {approx = true} : vector<2x8x1xf32> -> vector<2x8x1xf32>
    %175 = vector.broadcast %174 : vector<2x8x1xf32> to vector<2x8x8xf32>
    %176 = arith.mulf %171, %175 : vector<2x8x8xf32>
    %177 = arith.truncf %176 : vector<2x8x8xf32> to vector<2x8x8xbf16>
    %178 = vector.extract_strided_slice %161 {offsets = [0, 0, 0], sizes = [2, 8, 16], strides = [1, 1, 1]} : vector<2x8x32xbf16> to vector<2x8x16xbf16>
    "tpu.trace_start"() <{level = 10 : i32, message = "blm,bmd->bld"}> : () -> ()
    %cst_58 = arith.constant dense<0.000000e+00> : vector<2x8x16xf32>
    %179 = tpu.matmul %177, %178, %cst_58 {dimension_numbers = #tpu.dot_dimension_numbers<[2], [1], [1], [2], [0, 0, 0, 1, 1, 2], [0], [0]>} : vector<2x8x8xbf16>, vector<2x8x16xbf16>, vector<2x8x16xf32> -> vector<2x8x16xf32>
    "tpu.trace_stop"() : () -> ()
    %180 = vector.shape_cast %179 : vector<2x8x16xf32> to vector<16x16xf32>
    %181 = arith.truncf %180 : vector<16x16xf32> to vector<16x16xbf16>
    %c1_59 = arith.constant 1 : index
    %c0_60 = arith.constant 0 : index
    %c0_61 = arith.constant 0 : index
    %c0_62 = arith.constant 0 : index
    %182 = vector.load %arg3[%c1_59, %c0_60, %c0_61, %c0_62] : memref<2x2x16x32xbf16, #tpu.memory_space<vmem>>, vector<1x1x16x32xbf16>
    %183 = vector.shape_cast %182 : vector<1x1x16x32xbf16> to vector<16x32xbf16>
    %cst_63 = arith.constant dense<0.000000e+00> : vector<16x32xf32>
    %184 = tpu.matmul %181, %183, %cst_63 {dimension_numbers = #tpu.dot_dimension_numbers<[1], [0], [0], [1], [0, 0, 1, 1], [], []>} : vector<16x16xbf16>, vector<16x32xbf16>, vector<16x32xf32> -> vector<16x32xf32>
    %185 = vector.extract_strided_slice %155 {offsets = [0, 0, 16], sizes = [2, 8, 16], strides = [1, 1, 1]} : vector<2x8x32xbf16> to vector<2x8x16xbf16>
    %186 = vector.extract_strided_slice %158 {offsets = [0, 0, 16], sizes = [2, 8, 16], strides = [1, 1, 1]} : vector<2x8x32xbf16> to vector<2x8x16xbf16>
    "tpu.trace_start"() <{level = 10 : i32, message = "bld,bmd->blm"}> : () -> ()
    %cst_64 = arith.constant dense<0.000000e+00> : vector<2x8x8xf32>
    %187 = tpu.matmul %185, %186, %cst_64 {dimension_numbers = #tpu.dot_dimension_numbers<[2], [2], [1], [1], [0, 0, 0, 1, 1, 1], [0], [0]>} : vector<2x8x16xbf16>, vector<2x8x16xbf16>, vector<2x8x8xf32> -> vector<2x8x8xf32>
    "tpu.trace_stop"() : () -> ()
    %cst_65 = arith.constant 2.500000e-01 : f32
    %188 = vector.broadcast %cst_65 : f32 to vector<2x8x8xf32>
    %189 = arith.mulf %187, %188 : vector<2x8x8xf32>
    %cst_66 = arith.constant dense<0xFF800000> : vector<2x8xf32>
    %190 = vector.multi_reduction <maximumf>, %189, %cst_66 [2] : vector<2x8x8xf32> to vector<2x8xf32>
    %191 = vector.shape_cast %190 : vector<2x8xf32> to vector<2x8x1xf32>
    %192 = vector.broadcast %191 : vector<2x8x1xf32> to vector<2x8x8xf32>
    %193 = arith.subf %189, %192 : vector<2x8x8xf32>
    %194 = math.exp %193 : vector<2x8x8xf32>
    %cst_67 = arith.constant dense<0.000000e+00> : vector<2x8xf32>
    %195 = vector.multi_reduction <add>, %194, %cst_67 [2] : vector<2x8x8xf32> to vector<2x8xf32>
    %196 = vector.shape_cast %195 : vector<2x8xf32> to vector<2x8x1xf32>
    %197 = tpu.reciprocal %196 {approx = true} : vector<2x8x1xf32> -> vector<2x8x1xf32>
    %198 = vector.broadcast %197 : vector<2x8x1xf32> to vector<2x8x8xf32>
    %199 = arith.mulf %194, %198 : vector<2x8x8xf32>
    %200 = arith.truncf %199 : vector<2x8x8xf32> to vector<2x8x8xbf16>
    %201 = vector.extract_strided_slice %161 {offsets = [0, 0, 16], sizes = [2, 8, 16], strides = [1, 1, 1]} : vector<2x8x32xbf16> to vector<2x8x16xbf16>
    "tpu.trace_start"() <{level = 10 : i32, message = "blm,bmd->bld"}> : () -> ()
    %cst_68 = arith.constant dense<0.000000e+00> : vector<2x8x16xf32>
    %202 = tpu.matmul %200, %201, %cst_68 {dimension_numbers = #tpu.dot_dimension_numbers<[2], [1], [1], [2], [0, 0, 0, 1, 1, 2], [0], [0]>} : vector<2x8x8xbf16>, vector<2x8x16xbf16>, vector<2x8x16xf32> -> vector<2x8x16xf32>
    "tpu.trace_stop"() : () -> ()
    %203 = vector.shape_cast %202 : vector<2x8x16xf32> to vector<16x16xf32>
    %204 = arith.truncf %203 : vector<16x16xf32> to vector<16x16xbf16>
    %c1_69 = arith.constant 1 : index
    %c1_70 = arith.constant 1 : index
    %c0_71 = arith.constant 0 : index
    %c0_72 = arith.constant 0 : index
    %205 = vector.load %arg3[%c1_69, %c1_70, %c0_71, %c0_72] : memref<2x2x16x32xbf16, #tpu.memory_space<vmem>>, vector<1x1x16x32xbf16>
    %206 = vector.shape_cast %205 : vector<1x1x16x32xbf16> to vector<16x32xbf16>
    %cst_73 = arith.constant dense<0.000000e+00> : vector<16x32xf32>
    %207 = tpu.matmul %204, %206, %cst_73 {dimension_numbers = #tpu.dot_dimension_numbers<[1], [0], [0], [1], [0, 0, 1, 1], [], []>} : vector<16x16xbf16>, vector<16x32xbf16>, vector<16x32xf32> -> vector<16x32xf32>
    %208 = arith.addf %184, %207 : vector<16x32xf32>
    %209 = vector.broadcast %140 : vector<1x32xf32> to vector<16x32xf32>
    %210 = arith.addf %208, %209 : vector<16x32xf32>
    %211 = arith.addf %136, %210 : vector<16x32xf32>
    %cst_74 = arith.constant dense<0.000000e+00> : vector<16xf32>
    %212 = vector.multi_reduction <add>, %211, %cst_74 [1] : vector<16x32xf32> to vector<16xf32>
    %213 = vector.shape_cast %212 : vector<16xf32> to vector<16x1xf32>
    %cst_75 = arith.constant 3.200000e+01 : f32
    %214 = vector.broadcast %cst_75 : f32 to vector<16x1xf32>
    %215 = arith.divf %213, %214 : vector<16x1xf32>
    %216 = vector.broadcast %215 : vector<16x1xf32> to vector<16x32xf32>
    %217 = arith.subf %211, %216 : vector<16x32xf32>
    %218 = arith.mulf %217, %217 : vector<16x32xf32>
    %cst_76 = arith.constant dense<0.000000e+00> : vector<16xf32>
    %219 = vector.multi_reduction <add>, %218, %cst_76 [1] : vector<16x32xf32> to vector<16xf32>
    %220 = vector.shape_cast %219 : vector<16xf32> to vector<16x1xf32>
    %cst_77 = arith.constant 3.200000e+01 : f32
    %221 = vector.broadcast %cst_77 : f32 to vector<16x1xf32>
    %222 = arith.divf %220, %221 : vector<16x1xf32>
    %223 = vector.broadcast %215 : vector<16x1xf32> to vector<16x32xf32>
    %224 = arith.subf %211, %223 : vector<16x32xf32>
    %cst_78 = arith.constant 9.99999974E-6 : f32
    %225 = vector.broadcast %cst_78 : f32 to vector<16x1xf32>
    %226 = arith.addf %222, %225 : vector<16x1xf32>
    %227 = math.rsqrt %226 : vector<16x1xf32>
    %228 = vector.broadcast %227 : vector<16x1xf32> to vector<16x32xf32>
    %229 = arith.mulf %224, %228 : vector<16x32xf32>
    %230 = vector.broadcast %141 : vector<1x32xf32> to vector<16x32xf32>
    %231 = arith.mulf %229, %230 : vector<16x32xf32>
    %232 = vector.broadcast %142 : vector<1x32xf32> to vector<16x32xf32>
    %233 = arith.addf %231, %232 : vector<16x32xf32>
    %234 = arith.truncf %233 : vector<16x32xf32> to vector<16x32xbf16>
    %c1_79 = arith.constant 1 : index
    %c0_80 = arith.constant 0 : index
    %c0_81 = arith.constant 0 : index
    %235 = vector.load %arg4[%c1_79, %c0_80, %c0_81] : memref<2x32x128xbf16, #tpu.memory_space<vmem>>, vector<1x32x128xbf16>
    %236 = vector.shape_cast %235 : vector<1x32x128xbf16> to vector<32x128xbf16>
    %cst_82 = arith.constant dense<0.000000e+00> : vector<16x128xf32>
    %237 = tpu.matmul %234, %236, %cst_82 {dimension_numbers = #tpu.dot_dimension_numbers<[1], [0], [0], [1], [0, 0, 1, 1], [], []>} : vector<16x32xbf16>, vector<32x128xbf16>, vector<16x128xf32> -> vector<16x128xf32>
    %238 = vector.broadcast %143 : vector<1x128xf32> to vector<16x128xf32>
    %239 = arith.addf %237, %238 : vector<16x128xf32>
    %cst_83 = arith.constant 0.000000e+00 : f32
    %240 = vector.broadcast %cst_83 : f32 to vector<16x128xf32>
    %241 = arith.maximumf %239, %240 : vector<16x128xf32>
    %242 = arith.truncf %241 : vector<16x128xf32> to vector<16x128xbf16>
    %c1_84 = arith.constant 1 : index
    %c0_85 = arith.constant 0 : index
    %c0_86 = arith.constant 0 : index
    %243 = vector.load %arg5[%c1_84, %c0_85, %c0_86] : memref<2x128x32xbf16, #tpu.memory_space<vmem>>, vector<1x128x32xbf16>
    %244 = vector.shape_cast %243 : vector<1x128x32xbf16> to vector<128x32xbf16>
    %cst_87 = arith.constant dense<0.000000e+00> : vector<16x32xf32>
    %245 = tpu.matmul %242, %244, %cst_87 {dimension_numbers = #tpu.dot_dimension_numbers<[1], [0], [0], [1], [0, 0, 1, 1], [], []>} : vector<16x128xbf16>, vector<128x32xbf16>, vector<16x32xf32> -> vector<16x32xf32>
    %246 = vector.broadcast %144 : vector<1x32xf32> to vector<16x32xf32>
    %247 = arith.addf %245, %246 : vector<16x32xf32>
    %248 = arith.addf %233, %247 : vector<16x32xf32>
    %cst_88 = arith.constant dense<0.000000e+00> : vector<16xf32>
    %249 = vector.multi_reduction <add>, %248, %cst_88 [1] : vector<16x32xf32> to vector<16xf32>
    %250 = vector.shape_cast %249 : vector<16xf32> to vector<16x1xf32>
    %cst_89 = arith.constant 3.200000e+01 : f32
    %251 = vector.broadcast %cst_89 : f32 to vector<16x1xf32>
    %252 = arith.divf %250, %251 : vector<16x1xf32>
    %253 = vector.broadcast %252 : vector<16x1xf32> to vector<16x32xf32>
    %254 = arith.subf %248, %253 : vector<16x32xf32>
    %255 = arith.mulf %254, %254 : vector<16x32xf32>
    %cst_90 = arith.constant dense<0.000000e+00> : vector<16xf32>
    %256 = vector.multi_reduction <add>, %255, %cst_90 [1] : vector<16x32xf32> to vector<16xf32>
    %257 = vector.shape_cast %256 : vector<16xf32> to vector<16x1xf32>
    %cst_91 = arith.constant 3.200000e+01 : f32
    %258 = vector.broadcast %cst_91 : f32 to vector<16x1xf32>
    %259 = arith.divf %257, %258 : vector<16x1xf32>
    %260 = vector.broadcast %252 : vector<16x1xf32> to vector<16x32xf32>
    %261 = arith.subf %248, %260 : vector<16x32xf32>
    %cst_92 = arith.constant 9.99999974E-6 : f32
    %262 = vector.broadcast %cst_92 : f32 to vector<16x1xf32>
    %263 = arith.addf %259, %262 : vector<16x1xf32>
    %264 = math.rsqrt %263 : vector<16x1xf32>
    %265 = vector.broadcast %264 : vector<16x1xf32> to vector<16x32xf32>
    %266 = arith.mulf %261, %265 : vector<16x32xf32>
    %267 = vector.broadcast %145 : vector<1x32xf32> to vector<16x32xf32>
    %268 = arith.mulf %266, %267 : vector<16x32xf32>
    %269 = vector.broadcast %146 : vector<1x32xf32> to vector<16x32xf32>
    %270 = arith.addf %268, %269 : vector<16x32xf32>
    %c0_93 = arith.constant 0 : index
    %c0_94 = arith.constant 0 : index
    %271 = vector.load %arg7[%c0_93, %c0_94] : memref<16x32xf32, #tpu.memory_space<vmem>>, vector<16x32xf32>
    tpu.vector_store %arg7[%c0_93, %c0_94], %270 {strides = array<i32>} : memref<16x32xf32, #tpu.memory_space<vmem>>, vector<16x32xf32>,
    return
  }
}

</mosaic_0001>

<llo_original>
// kernel: transformer_classifier_forward.1
$region0: #{transformer_classifier_forward.1}
  #allocation0 [shape = 'u32[]', space=smem, size = 0x4, offset = 0x4, fixed_abs, tag = 'smem constant byte address 0x4 - core index']
  #allocation1 [shape = 'u32[144,128]{1,0:T(1,128)}', space=vmem, size = 0x12000, scoped, tag = 'internal scratch']
  %s0 = inlined_call_operand.vmem [shape: f32[16,32], index: 0, kind: input, shape index: {}]
  %s1 = inlined_call_operand.vmem [shape: f32[16,32], index: 1, kind: input, shape index: {}]
  %s2 = inlined_call_operand.vmem [shape: bf16[2,32,128], index: 2, kind: input, shape index: {}]
  %s3 = inlined_call_operand.vmem [shape: bf16[2,2,16,32], index: 3, kind: input, shape index: {}]
  %s4 = inlined_call_operand.vmem [shape: bf16[2,32,128], index: 4, kind: input, shape index: {}]
  %s5 = inlined_call_operand.vmem [shape: bf16[2,128,32], index: 5, kind: input, shape index: {}]
  %s6 = inlined_call_operand.vmem [shape: f32[2,8,128], index: 6, kind: input, shape index: {}]
  %s7 = inlined_call_operand.hbm [shape: f32[16,32], index: 7, kind: output, shape index: {}]
  %s8 = sld [smem:[#allocation0]]
  $region38: #{transformer_classifier_forward.1} parent=0
    _
  %s10 = ssub.s32 1, %s8
  %s11 = scalar_select 0, %s10, %s8
  $region1: #{transformer_classifier_forward.1} parent=0
    #allocation2 [shape = 'u8[8192]{0}', space=vmem, size = 0x2000, scoped, tag = 'output window, operand 0, single buffered']
    #allocation3 [shape = 's32[1]{0}', space=sflag, size = 0x4, scoped, tag = 'scoped memory for transformer_classifier_forward.1']
    %12 = vsyncpa [#allocation3], 0
    // Predicated region
    $region2: #{transformer_classifier_forward.1} parent=1 // pred_check
      _
    $region3: #{transformer_classifier_forward.1} parent=1 // pred_check_branch
      %14 = sbr.rel (0) target = $region5
    $region4: #{transformer_classifier_forward.1} parent=1 // pred_region
      _
    $region5: #{transformer_classifier_forward.1} parent=1 // pred_fallthru
      _
    // Predicated region
    $region6: #{transformer_classifier_forward.1} parent=1 // pred_check
      _
    $region7: #{transformer_classifier_forward.1} parent=1 // pred_check_branch
      %16 = sbr.rel (0) target = $region9
    $region8: #{transformer_classifier_forward.1} parent=1 // pred_region
      _
    $region9: #{transformer_classifier_forward.1} parent=1 // pred_fallthru
      _
    // Predicated region
    $region10: #{transformer_classifier_forward.1} parent=1 // pred_check
      _
    $region11: #{transformer_classifier_forward.1} parent=1 // pred_check_branch
      %18 = sbr.rel (0) target = $region13
    $region12: #{transformer_classifier_forward.1} parent=1 // pred_region
      _
    $region13: #{transformer_classifier_forward.1} parent=1 // pred_fallthru
      _
    // Predicated region
    $region14: #{transformer_classifier_forward.1} parent=1 // pred_check
      _
    $region15: #{transformer_classifier_forward.1} parent=1 // pred_check_branch
      %20 = sbr.rel (0) target = $region17
    $region16: #{transformer_classifier_forward.1} parent=1 // pred_region
      _
    $region17: #{transformer_classifier_forward.1} parent=1 // pred_fallthru
      _
    // Predicated region
    $region18: #{transformer_classifier_forward.1} parent=1 // pred_check
      _
    $region19: #{transformer_classifier_forward.1} parent=1 // pred_check_branch
      %22 = sbr.rel (0) target = $region21
    $region20: #{transformer_classifier_forward.1} parent=1 // pred_region
      _
    $region21: #{transformer_classifier_forward.1} parent=1 // pred_fallthru
      _
    // Predicated region
    $region22: #{transformer_classifier_forward.1} parent=1 // pred_check
      _
    $region23: #{transformer_classifier_forward.1} parent=1 // pred_check_branch
      %24 = sbr.rel (0) target = $region25
    $region24: #{transformer_classifier_forward.1} parent=1 // pred_region
      _
    $region25: #{transformer_classifier_forward.1} parent=1 // pred_fallthru
      _
    // Predicated region
    $region26: #{transformer_classifier_forward.1} parent=1 // pred_check
      _
    $region27: #{transformer_classifier_forward.1} parent=1 // pred_check_branch
      %26 = sbr.rel (0) target = $region29
    $region28: #{transformer_classifier_forward.1} parent=1 // pred_region
      _
    $region29: #{transformer_classifier_forward.1} parent=1 // pred_fallthru
      _
    %v28 = vld [vmem:[%s0] sm:$0xff]
    %v29 = vld [vmem:[%s0 + $0x8] sm:$0xff]
    %v30 = vld [vmem:[%s1] sm:$0xff]
    %v31 = vld [vmem:[%s1 + $0x8] sm:$0xff]
    %v32 = vadd.f32 %v28, %v30
    %v33 = vadd.f32 %v29, %v31
    %v34 = vld [vmem:[%s6] sm:$0xff]
    %v35 = vpack.c.bf16 %v33, %v32
    %v36 = vld [vmem:[%s2] sm:$0xf]
    %v37 = vld [vmem:[%s2 + $0x4] sm:$0xf]
    %v38 = vld [vmem:[%s2 + $0x8] sm:$0xf]
    %v39 = vld [vmem:[%s2 + $0xc] sm:$0xf]
    %v40 = vlaneseq
    %v41 = vshrl.u32 %v40, 7
    %v42 = vsub.s32 0, %v41
    %v43 = vrot.slane %v34, %v42
    %v48 = vunpack.c.l.b16 %v36
    %v49 = vunpack.c.l.b16 %v37
    %v50 = vunpack.c.l.b16 %v38
    %v51 = vunpack.c.l.b16 %v39
    %v52 = vpack.c.b16 %v49, %v48
    %v53 = vpack.c.b16 %v51, %v50
    %vm56 = vcmask 261120
    %v58 = vsel %vm56, %v35, 0
    %60 = vmatprep.subr.bf16.mxu0 0
    %61 = vmatpush1.bf16.msra.mxu0 %v52
    %62 = vmatprep.subr.bf16.mxu0 0
    %63 = vmatpush1.bf16.msra.mxu0 %v53
    %64 = vmatprep.subr.bf16.mxu0 0
    %65 = vmatpush1.bf16.msra.mxu0 0
    %66 = vmatprep.subr.bf16.mxu0 0
    %67 = vmatpush1.bf16.msra.mxu0 0
    %68 = vmatprep.subr.bf16.mxu0 0
    %69 = vmatpush1.bf16.msra.mxu0 0
    %70 = vmatprep.subr.bf16.mxu0 0
    %71 = vmatpush1.bf16.msra.mxu0 0
    %72 = vmatprep.subr.bf16.mxu0 0
    %73 = vmatpush1.bf16.msra.mxu0 0
    %74 = vmatprep.subr.bf16.mxu0 0
    %75 = vmatpush1.bf16.msra.mxu0 0
    %76 = vmatprep.subr.bf16.mxu0 0
    %77 = vmatpush1.bf16.msra.mxu0 0
    %78 = vmatprep.subr.bf16.mxu0 0
    %79 = vmatpush1.bf16.msra.mxu0 0
    %80 = vmatprep.subr.bf16.mxu0 0
    %81 = vmatpush1.bf16.msra.mxu0 0
    %82 = vmatprep.subr.bf16.mxu0 0
    %83 = vmatpush1.bf16.msra.mxu0 0
    %84 = vmatprep.subr.bf16.mxu0 0
    %85 = vmatpush1.bf16.msra.mxu0 0
    %86 = vmatprep.subr.bf16.mxu0 0
    %87 = vmatpush1.bf16.msra.mxu0 0
    %88 = vmatprep.subr.bf16.mxu0 0
    %89 = vmatpush1.bf16.msra.mxu0 0
    %90 = vmatprep.subr.bf16.mxu0 0
    %91 = vmatpush1.bf16.msra.mxu0 0
    %92 = vmatprep.mubr.bf16.mxu0 0
    %93 = vmatmul.mubr.bf16.gmra.mrb[0].mxu0 %v58
    %v94 = vpop.f32.mrb[0].mxu0
    %v95 = vadd.f32 %v43, %v94
    %v96 = vpop.f32.mrb[0].mxu0
    %v97 = vpop.f32.mrb[0].mxu0
    %v98 = vadd.f32 %v43, %v97
    %v99 = vpop.f32.mrb[0].mxu0
    %100 = vdwg.mxu0
    %v101 = vpack.c.bf16 %v95, %v95
    %v102 = vpack.c.bf16 %v98, %v98
    %104 = vrot.lane.b32.xlu0 %v101, 96
    %v105 = vpop.permute.xlu0 %104
    %vm106 = vcmask 130048
    %v108 = vsel %vm106, %v101, 0
    %v111 = vsel %vm106, %v105, 0
    %113 = vmatprep.subr.bf16.mxu0 0
    %114 = vmatpush1.bf16.xpose.msra.mxu0 %v111
    %115 = vmatprep.subr.bf16.mxu0 0
    %116 = vmatpush1.bf16.xpose.msra.mxu0 0
    %117 = vmatprep.subr.bf16.mxu0 0
    %118 = vmatpush1.bf16.xpose.msra.mxu0 0
    %119 = vmatprep.subr.bf16.mxu0 0
    %120 = vmatpush1.bf16.xpose.msra.mxu0 0
    %121 = vmatprep.subr.bf16.mxu0 0
    %122 = vmatpush1.bf16.xpose.msra.mxu0 0
    %123 = vmatprep.subr.bf16.mxu0 0
    %124 = vmatpush1.bf16.xpose.msra.mxu0 0
    %125 = vmatprep.subr.bf16.mxu0 0
    %126 = vmatpush1.bf16.xpose.msra.mxu0 0
    %127 = vmatprep.subr.bf16.mxu0 0
    %128 = vmatpush1.bf16.xpose.msra.mxu0 0
    %129 = vmatprep.subr.bf16.mxu0 0
    %130 = vmatpush1.bf16.xpose.msra.mxu0 0
    %131 = vmatprep.subr.bf16.mxu0 0
    %132 = vmatpush1.bf16.xpose.msra.mxu0 0
    %133 = vmatprep.subr.bf16.mxu0 0
    %134 = vmatpush1.bf16.xpose.msra.mxu0 0
    %135 = vmatprep.subr.bf16.mxu0 0
    %136 = vmatpush1.bf16.xpose.msra.mxu0 0
    %137 = vmatprep.subr.bf16.mxu0 0
    %138 = vmatpush1.bf16.xpose.msra.mxu0 0
    %139 = vmatprep.subr.bf16.mxu0 0
    %140 = vmatpush1.bf16.xpose.msra.mxu0 0
    %141 = vmatprep.subr.bf16.mxu0 0
    %142 = vmatpush1.bf16.xpose.msra.mxu0 0
    %143 = vmatprep.subr.bf16.mxu0 0
    %144 = vmatpush1.bf16.xpose.msra.mxu0 0
    %145 = vmatprep.mubr.bf16.mxu0 0
    %146 = vmatmul.mubr.bf16.gmra.mrb[0].mxu0 %v108
    %v147 = vpop.f32.mrb[0].mxu0
    %v148 = vadd.f32 0.0, %v147
    %v149 = vpop.f32.mrb[0].mxu0
    %v150 = vpop.f32.mrb[0].mxu0
    %v151 = vpop.f32.mrb[0].mxu0
    %152 = vdwg.mxu0
    %154 = vrot.lane.b32.xlu0 %v102, 96
    %v155 = vpop.permute.xlu0 %154
    %v157 = vsel %vm106, %v102, 0
    %v160 = vsel %vm106, %v155, 0
    %162 = vmatprep.subr.bf16.mxu0 0
    %163 = vmatpush1.bf16.xpose.msra.mxu0 %v160
    %164 = vmatprep.subr.bf16.mxu0 0
    %165 = vmatpush1.bf16.xpose.msra.mxu0 0
    %166 = vmatprep.subr.bf16.mxu0 0
    %167 = vmatpush1.bf16.xpose.msra.mxu0 0
    %168 = vmatprep.subr.bf16.mxu0 0
    %169 = vmatpush1.bf16.xpose.msra.mxu0 0
    %170 = vmatprep.subr.bf16.mxu0 0
    %171 = vmatpush1.bf16.xpose.msra.mxu0 0
    %172 = vmatprep.subr.bf16.mxu0 0
    %173 = vmatpush1.bf16.xpose.msra.mxu0 0
    %174 = vmatprep.subr.bf16.mxu0 0
    %175 = vmatpush1.bf16.xpose.msra.mxu0 0
    %176 = vmatprep.subr.bf16.mxu0 0
    %177 = vmatpush1.bf16.xpose.msra.mxu0 0
    %178 = vmatprep.subr.bf16.mxu0 0
    %179 = vmatpush1.bf16.xpose.msra.mxu0 0
    %180 = vmatprep.subr.bf16.mxu0 0
    %181 = vmatpush1.bf16.xpose.msra.mxu0 0
    %182 = vmatprep.subr.bf16.mxu0 0
    %183 = vmatpush1.bf16.xpose.msra.mxu0 0
    %184 = vmatprep.subr.bf16.mxu0 0
    %185 = vmatpush1.bf16.xpose.msra.mxu0 0
    %186 = vmatprep.subr.bf16.mxu0 0
    %187 = vmatpush1.bf16.xpose.msra.mxu0 0
    %188 = vmatprep.subr.bf16.mxu0 0
    %189 = vmatpush1.bf16.xpose.msra.mxu0 0
    %190 = vmatprep.subr.bf16.mxu0 0
    %191 = vmatpush1.bf16.xpose.msra.mxu0 0
    %192 = vmatprep.subr.bf16.mxu0 0
    %193 = vmatpush1.bf16.xpose.msra.mxu0 0
    %194 = vmatprep.mubr.bf16.mxu0 0
    %195 = vmatmul.mubr.bf16.gmra.mrb[0].mxu0 %v157
    %v196 = vpop.f32.mrb[0].mxu0
    %v197 = vadd.f32 0.0, %v196
    %v198 = vpop.f32.mrb[0].mxu0
    %v199 = vpop.f32.mrb[0].mxu0
    %v200 = vpop.f32.mrb[0].mxu0
    %201 = vdwg.mxu0
    %v202 = vmul.f32 %v148, 0.25
    %v203 = vmul.f32 %v197, 0.25
    %vm204 = vcmask 64512
    %v205 = vsel %vm204, %v202, -inf
    %206 = vmax.xlane.f32.xlu0 %v205
    %v207 = vpop.xlane.xlu0 %206
    %v208 = vsel %vm204, %v203, -inf
    %209 = vmax.xlane.f32.xlu0 %v208
    %v210 = vpop.xlane.xlu0 %209
    %v211 = vsub.f32 %v202, %v207
    %v212 = vsub.f32 %v203, %v210
    %v213 = vmul.f32 %v211, 1.442695
    %v214 = vpow.pop %v213
    %v215 = vmul.f32 %v212, 1.442695
    %v216 = vpow.pop %v215
    %v217 = vsel %vm204, %v214, 0.0
    %218 = vadd.xlane.f32.xlu0 %v217
    %v219 = vpop.xlane.xlu0 %218
    %v220 = vsel %vm204, %v216, 0.0
    %221 = vadd.xlane.f32.xlu0 %v220
    %v222 = vpop.xlane.xlu0 %221
    %v223 = vrcp.pop %v219
    %v224 = vrcp.pop %v222
    %v225 = vmul.f32 %v214, %v223
    %v226 = vmul.f32 %v216, %v224
    %v227 = vpack.c.bf16 %v225, %v225
    %v228 = vpack.c.bf16 %v226, %v226
    %229 = vrot.lane.b32.xlu0 %v101, 64
    %v230 = vpop.permute.xlu0 %229
    %v232 = vsel %vm204, %v227, 0
    %vm234 = vcmask 1043456
    %v236 = vsel %vm234, %v230, 0
    %238 = vmatprep.subr.bf16.mxu0 0
    %239 = vmatpush1.bf16.msra.mxu0 %v236
    %240 = vmatprep.subr.bf16.mxu0 0
    %241 = vmatpush1.bf16.msra.mxu0 0
    %242 = vmatprep.subr.bf16.mxu0 0
    %243 = vmatpush1.bf16.msra.mxu0 0
    %244 = vmatprep.subr.bf16.mxu0 0
    %245 = vmatpush1.bf16.msra.mxu0 0
    %246 = vmatprep.subr.bf16.mxu0 0
    %247 = vmatpush1.bf16.msra.mxu0 0
    %248 = vmatprep.subr.bf16.mxu0 0
    %249 = vmatpush1.bf16.msra.mxu0 0
    %250 = vmatprep.subr.bf16.mxu0 0
    %251 = vmatpush1.bf16.msra.mxu0 0
    %252 = vmatprep.subr.bf16.mxu0 0
    %253 = vmatpush1.bf16.msra.mxu0 0
    %254 = vmatprep.subr.bf16.mxu0 0
    %255 = vmatpush1.bf16.msra.mxu0 0
    %256 = vmatprep.subr.bf16.mxu0 0
    %257 = vmatpush1.bf16.msra.mxu0 0
    %258 = vmatprep.subr.bf16.mxu0 0
    %259 = vmatpush1.bf16.msra.mxu0 0
    %260 = vmatprep.subr.bf16.mxu0 0
    %261 = vmatpush1.bf16.msra.mxu0 0
    %262 = vmatprep.subr.bf16.mxu0 0
    %263 = vmatpush1.bf16.msra.mxu0 0
    %264 = vmatprep.subr.bf16.mxu0 0
    %265 = vmatpush1.bf16.msra.mxu0 0
    %266 = vmatprep.subr.bf16.mxu0 0
    %267 = vmatpush1.bf16.msra.mxu0 0
    %268 = vmatprep.subr.bf16.mxu0 0
    %269 = vmatpush1.bf16.msra.mxu0 0
    %270 = vmatprep.mubr.bf16.mxu0 0
    %271 = vmatmul.mubr.bf16.gmra.mrb[0].mxu0 %v232
    %v272 = vpop.f32.mrb[0].mxu0
    %v273 = vadd.f32 0.0, %v272
    %v274 = vpop.f32.mrb[0].mxu0
    %v275 = vpop.f32.mrb[0].mxu0
    %v276 = vpop.f32.mrb[0].mxu0
    %277 = vdwg.mxu0
    %278 = vrot.lane.b32.xlu0 %v102, 64
    %v279 = vpop.permute.xlu0 %278
    %v281 = vsel %vm204, %v228, 0
    %v284 = vsel %vm234, %v279, 0
    %286 = vmatprep.subr.bf16.mxu0 0
    %287 = vmatpush1.bf16.msra.mxu0 %v284
    %288 = vmatprep.subr.bf16.mxu0 0
    %289 = vmatpush1.bf16.msra.mxu0 0
    %290 = vmatprep.subr.bf16.mxu0 0
    %291 = vmatpush1.bf16.msra.mxu0 0
    %292 = vmatprep.subr.bf16.mxu0 0
    %293 = vmatpush1.bf16.msra.mxu0 0
    %294 = vmatprep.subr.bf16.mxu0 0
    %295 = vmatpush1.bf16.msra.mxu0 0
    %296 = vmatprep.subr.bf16.mxu0 0
    %297 = vmatpush1.bf16.msra.mxu0 0
    %298 = vmatprep.subr.bf16.mxu0 0
    %299 = vmatpush1.bf16.msra.mxu0 0
    %300 = vmatprep.subr.bf16.mxu0 0
    %301 = vmatpush1.bf16.msra.mxu0 0
    %302 = vmatprep.subr.bf16.mxu0 0
    %303 = vmatpush1.bf16.msra.mxu0 0
    %304 = vmatprep.subr.bf16.mxu0 0
    %305 = vmatpush1.bf16.msra.mxu0 0
    %306 = vmatprep.subr.bf16.mxu0 0
    %307 = vmatpush1.bf16.msra.mxu0 0
    %308 = vmatprep.subr.bf16.mxu0 0
    %309 = vmatpush1.bf16.msra.mxu0 0
    %310 = vmatprep.subr.bf16.mxu0 0
    %311 = vmatpush1.bf16.msra.mxu0 0
    %312 = vmatprep.subr.bf16.mxu0 0
    %313 = vmatpush1.bf16.msra.mxu0 0
    %314 = vmatprep.subr.bf16.mxu0 0
    %315 = vmatpush1.bf16.msra.mxu0 0
    %316 = vmatprep.subr.bf16.mxu0 0
    %317 = vmatpush1.bf16.msra.mxu0 0
    %318 = vmatprep.mubr.bf16.mxu0 0
    %319 = vmatmul.mubr.bf16.gmra.mrb[0].mxu0 %v281
    %v320 = vpop.f32.mrb[0].mxu0
    %v321 = vadd.f32 0.0, %v320
    %v322 = vpop.f32.mrb[0].mxu0
    %v323 = vpop.f32.mrb[0].mxu0
    %v324 = vpop.f32.mrb[0].mxu0
    %325 = vdwg.mxu0
    %v326 = vpack.c.bf16 %v321, %v273
    %v327 = vld [vmem:[%s3] sm:$0xf]
    %v328 = vld [vmem:[%s3 + $0x4] sm:$0xf]
    %329 = vrot.lane.b32.xlu0 %v101, 112
    %v330 = vpop.permute.xlu0 %329
    %331 = vrot.lane.b32.xlu0 %v101, 80
    %v332 = vpop.permute.xlu0 %331
    %v334 = vsel %vm106, %v330, 0
    %v337 = vsel %vm106, %v332, 0
    %339 = vmatprep.subr.bf16.mxu0 0
    %340 = vmatpush1.bf16.xpose.msra.mxu0 %v337
    %341 = vmatprep.subr.bf16.mxu0 0
    %342 = vmatpush1.bf16.xpose.msra.mxu0 0
    %343 = vmatprep.subr.bf16.mxu0 0
    %344 = vmatpush1.bf16.xpose.msra.mxu0 0
    %345 = vmatprep.subr.bf16.mxu0 0
    %346 = vmatpush1.bf16.xpose.msra.mxu0 0
    %347 = vmatprep.subr.bf16.mxu0 0
    %348 = vmatpush1.bf16.xpose.msra.mxu0 0
    %349 = vmatprep.subr.bf16.mxu0 0
    %350 = vmatpush1.bf16.xpose.msra.mxu0 0
    %351 = vmatprep.subr.bf16.mxu0 0
    %352 = vmatpush1.bf16.xpose.msra.mxu0 0
    %353 = vmatprep.subr.bf16.mxu0 0
    %354 = vmatpush1.bf16.xpose.msra.mxu0 0
    %355 = vmatprep.subr.bf16.mxu0 0
    %356 = vmatpush1.bf16.xpose.msra.mxu0 0
    %357 = vmatprep.subr.bf16.mxu0 0
    %358 = vmatpush1.bf16.xpose.msra.mxu0 0
    %359 = vmatprep.subr.bf16.mxu0 0
    %360 = vmatpush1.bf16.xpose.msra.mxu0 0
    %361 = vmatprep.subr.bf16.mxu0 0
    %362 = vmatpush1.bf16.xpose.msra.mxu0 0
    %363 = vmatprep.subr.bf16.mxu0 0
    %364 = vmatpush1.bf16.xpose.msra.mxu0 0
    %365 = vmatprep.subr.bf16.mxu0 0
    %366 = vmatpush1.bf16.xpose.msra.mxu0 0
    %367 = vmatprep.subr.bf16.mxu0 0
    %368 = vmatpush1.bf16.xpose.msra.mxu0 0
    %369 = vmatprep.subr.bf16.mxu0 0
    %370 = vmatpush1.bf16.xpose.msra.mxu0 0
    %371 = vmatprep.mubr.bf16.mxu0 0
    %372 = vmatmul.mubr.bf16.gmra.mrb[0].mxu0 %v334
    %v373 = vpop.f32.mrb[0].mxu0
    %v374 = vadd.f32 0.0, %v373
    %v375 = vpop.f32.mrb[0].mxu0
    %v376 = vpop.f32.mrb[0].mxu0
    %v377 = vpop.f32.mrb[0].mxu0
    %378 = vdwg.mxu0
    %379 = vrot.lane.b32.xlu0 %v102, 112
    %v380 = vpop.permute.xlu0 %379
    %381 = vrot.lane.b32.xlu0 %v102, 80
    %v382 = vpop.permute.xlu0 %381
    %v384 = vsel %vm106, %v380, 0
    %v387 = vsel %vm106, %v382, 0
    %389 = vmatprep.subr.bf16.mxu0 0
    %390 = vmatpush1.bf16.xpose.msra.mxu0 %v387
    %391 = vmatprep.subr.bf16.mxu0 0
    %392 = vmatpush1.bf16.xpose.msra.mxu0 0
    %393 = vmatprep.subr.bf16.mxu0 0
    %394 = vmatpush1.bf16.xpose.msra.mxu0 0
    %395 = vmatprep.subr.bf16.mxu0 0
    %396 = vmatpush1.bf16.xpose.msra.mxu0 0
    %397 = vmatprep.subr.bf16.mxu0 0
    %398 = vmatpush1.bf16.xpose.msra.mxu0 0
    %399 = vmatprep.subr.bf16.mxu0 0
    %400 = vmatpush1.bf16.xpose.msra.mxu0 0
    %401 = vmatprep.subr.bf16.mxu0 0
    %402 = vmatpush1.bf16.xpose.msra.mxu0 0
    %403 = vmatprep.subr.bf16.mxu0 0
    %404 = vmatpush1.bf16.xpose.msra.mxu0 0
    %405 = vmatprep.subr.bf16.mxu0 0
    %406 = vmatpush1.bf16.xpose.msra.mxu0 0
    %407 = vmatprep.subr.bf16.mxu0 0
    %408 = vmatpush1.bf16.xpose.msra.mxu0 0
    %409 = vmatprep.subr.bf16.mxu0 0
    %410 = vmatpush1.bf16.xpose.msra.mxu0 0
    %411 = vmatprep.subr.bf16.mxu0 0
    %412 = vmatpush1.bf16.xpose.msra.mxu0 0
    %413 = vmatprep.subr.bf16.mxu0 0
    %414 = vmatpush1.bf16.xpose.msra.mxu0 0
    %415 = vmatprep.subr.bf16.mxu0 0
    %416 = vmatpush1.bf16.xpose.msra.mxu0 0
    %417 = vmatprep.subr.bf16.mxu0 0
    %418 = vmatpush1.bf16.xpose.msra.mxu0 0
    %419 = vmatprep.subr.bf16.mxu0 0
    %420 = vmatpush1.bf16.xpose.msra.mxu0 0
    %421 = vmatprep.mubr.bf16.mxu0 0
    %422 = vmatmul.mubr.bf16.gmra.mrb[0].mxu0 %v384
    %v423 = vpop.f32.mrb[0].mxu0
    %v424 = vadd.f32 0.0, %v423
    %v425 = vpop.f32.mrb[0].mxu0
    %v426 = vpop.f32.mrb[0].mxu0
    %v427 = vpop.f32.mrb[0].mxu0
    %428 = vdwg.mxu0
    %v429 = vmul.f32 %v374, 0.25
    %v430 = vmul.f32 %v424, 0.25
    %v431 = vsel %vm204, %v429, -inf
    %432 = vmax.xlane.f32.xlu0 %v431
    %v433 = vpop.xlane.xlu0 %432
    %v434 = vsel %vm204, %v430, -inf
    %435 = vmax.xlane.f32.xlu0 %v434
    %v436 = vpop.xlane.xlu0 %435
    %v437 = vsub.f32 %v429, %v433
    %v438 = vsub.f32 %v430, %v436
    %v439 = vmul.f32 %v437, 1.442695
    %v440 = vpow.pop %v439
    %v441 = vmul.f32 %v438, 1.442695
    %v442 = vpow.pop %v441
    %v443 = vsel %vm204, %v440, 0.0
    %444 = vadd.xlane.f32.xlu0 %v443
    %v445 = vpop.xlane.xlu0 %444
    %v446 = vsel %vm204, %v442, 0.0
    %447 = vadd.xlane.f32.xlu0 %v446
    %v448 = vpop.xlane.xlu0 %447
    %v449 = vrcp.pop %v445
    %v450 = vrcp.pop %v448
    %v451 = vmul.f32 %v440, %v449
    %v452 = vmul.f32 %v442, %v450
    %v453 = vpack.c.bf16 %v451, %v451
    %v454 = vpack.c.bf16 %v452, %v452
    %455 = vrot.lane.b32.xlu0 %v101, 48
    %v456 = vpop.permute.xlu0 %455
    %v458 = vsel %vm204, %v453, 0
    %v461 = vsel %vm234, %v456, 0
    %463 = vmatprep.subr.bf16.mxu0 0
    %464 = vmatpush1.bf16.msra.mxu0 %v461
    %465 = vmatprep.subr.bf16.mxu0 0
    %466 = vmatpush1.bf16.msra.mxu0 0
    %467 = vmatprep.subr.bf16.mxu0 0
    %468 = vmatpush1.bf16.msra.mxu0 0
    %469 = vmatprep.subr.bf16.mxu0 0
    %470 = vmatpush1.bf16.msra.mxu0 0
    %471 = vmatprep.subr.bf16.mxu0 0
    %472 = vmatpush1.bf16.msra.mxu0 0
    %473 = vmatprep.subr.bf16.mxu0 0
    %474 = vmatpush1.bf16.msra.mxu0 0
    %475 = vmatprep.subr.bf16.mxu0 0
    %476 = vmatpush1.bf16.msra.mxu0 0
    %477 = vmatprep.subr.bf16.mxu0 0
    %478 = vmatpush1.bf16.msra.mxu0 0
    %479 = vmatprep.subr.bf16.mxu0 0
    %480 = vmatpush1.bf16.msra.mxu0 0
    %481 = vmatprep.subr.bf16.mxu0 0
    %482 = vmatpush1.bf16.msra.mxu0 0
    %483 = vmatprep.subr.bf16.mxu0 0
    %484 = vmatpush1.bf16.msra.mxu0 0
    %485 = vmatprep.subr.bf16.mxu0 0
    %486 = vmatpush1.bf16.msra.mxu0 0
    %487 = vmatprep.subr.bf16.mxu0 0
    %488 = vmatpush1.bf16.msra.mxu0 0
    %489 = vmatprep.subr.bf16.mxu0 0
    %490 = vmatpush1.bf16.msra.mxu0 0
    %491 = vmatprep.subr.bf16.mxu0 0
    %492 = vmatpush1.bf16.msra.mxu0 0
    %493 = vmatprep.subr.bf16.mxu0 0
    %494 = vmatpush1.bf16.msra.mxu0 0
    %495 = vmatprep.mubr.bf16.mxu0 0
    %496 = vmatmul.mubr.bf16.gmra.mrb[0].mxu0 %v458
    %v497 = vpop.f32.mrb[0].mxu0
    %v498 = vadd.f32 0.0, %v497
    %v499 = vpop.f32.mrb[0].mxu0
    %v500 = vpop.f32.mrb[0].mxu0
    %v501 = vpop.f32.mrb[0].mxu0
    %502 = vdwg.mxu0
    %503 = vrot.lane.b32.xlu0 %v102, 48
    %v504 = vpop.permute.xlu0 %503
    %v506 = vsel %vm204, %v454, 0
    %v509 = vsel %vm234, %v504, 0
    %511 = vmatprep.subr.bf16.mxu0 0
    %512 = vmatpush1.bf16.msra.mxu0 %v509
    %513 = vmatprep.subr.bf16.mxu0 0
    %514 = vmatpush1.bf16.msra.mxu0 0
    %515 = vmatprep.subr.bf16.mxu0 0
    %516 = vmatpush1.bf16.msra.mxu0 0
    %517 = vmatprep.subr.bf16.mxu0 0
    %518 = vmatpush1.bf16.msra.mxu0 0
    %519 = vmatprep.subr.bf16.mxu0 0
    %520 = vmatpush1.bf16.msra.mxu0 0
    %521 = vmatprep.subr.bf16.mxu0 0
    %522 = vmatpush1.bf16.msra.mxu0 0
    %523 = vmatprep.subr.bf16.mxu0 0
    %524 = vmatpush1.bf16.msra.mxu0 0
    %525 = vmatprep.subr.bf16.mxu0 0
    %526 = vmatpush1.bf16.msra.mxu0 0
    %527 = vmatprep.subr.bf16.mxu0 0
    %528 = vmatpush1.bf16.msra.mxu0 0
    %529 = vmatprep.subr.bf16.mxu0 0
    %530 = vmatpush1.bf16.msra.mxu0 0
    %531 = vmatprep.subr.bf16.mxu0 0
    %532 = vmatpush1.bf16.msra.mxu0 0
    %533 = vmatprep.subr.bf16.mxu0 0
    %534 = vmatpush1.bf16.msra.mxu0 0
    %535 = vmatprep.subr.bf16.mxu0 0
    %536 = vmatpush1.bf16.msra.mxu0 0
    %537 = vmatprep.subr.bf16.mxu0 0
    %538 = vmatpush1.bf16.msra.mxu0 0
    %539 = vmatprep.subr.bf16.mxu0 0
    %540 = vmatpush1.bf16.msra.mxu0 0
    %541 = vmatprep.subr.bf16.mxu0 0
    %542 = vmatpush1.bf16.msra.mxu0 0
    %543 = vmatprep.mubr.bf16.mxu0 0
    %544 = vmatmul.mubr.bf16.gmra.mrb[0].mxu0 %v506
    %v545 = vpop.f32.mrb[0].mxu0
    %v546 = vadd.f32 0.0, %v545
    %v547 = vpop.f32.mrb[0].mxu0
    %v548 = vpop.f32.mrb[0].mxu0
    %v549 = vpop.f32.mrb[0].mxu0
    %550 = vdwg.mxu0
    %v551 = vpack.c.bf16 %v546, %v498
    %s552 = scalar_lea.vmem %s3, 8
    %v553 = vld [vmem:[%s552] sm:$0xf]
    %v554 = vld [vmem:[%s552 + $0x4] sm:$0xf]
    %v557 = vunpack.c.l.b16 %v553
    %v558 = vunpack.c.l.b16 %v554
    %v559 = vpack.c.b16 %v558, %v557
    %v562 = vsel %vm106, %v551, 0
    %564 = vmatprep.subr.bf16.mxu0 0
    %565 = vmatpush1.bf16.msra.mxu0 %v559
    %566 = vmatprep.subr.bf16.mxu0 0
    %567 = vmatpush1.bf16.msra.mxu0 0
    %568 = vmatprep.subr.bf16.mxu0 0
    %569 = vmatpush1.bf16.msra.mxu0 0
    %570 = vmatprep.subr.bf16.mxu0 0
    %571 = vmatpush1.bf16.msra.mxu0 0
    %572 = vmatprep.subr.bf16.mxu0 0
    %573 = vmatpush1.bf16.msra.mxu0 0
    %574 = vmatprep.subr.bf16.mxu0 0
    %575 = vmatpush1.bf16.msra.mxu0 0
    %576 = vmatprep.subr.bf16.mxu0 0
    %577 = vmatpush1.bf16.msra.mxu0 0
    %578 = vmatprep.subr.bf16.mxu0 0
    %579 = vmatpush1.bf16.msra.mxu0 0
    %580 = vmatprep.subr.bf16.mxu0 0
    %581 = vmatpush1.bf16.msra.mxu0 0
    %582 = vmatprep.subr.bf16.mxu0 0
    %583 = vmatpush1.bf16.msra.mxu0 0
    %584 = vmatprep.subr.bf16.mxu0 0
    %585 = vmatpush1.bf16.msra.mxu0 0
    %586 = vmatprep.subr.bf16.mxu0 0
    %587 = vmatpush1.bf16.msra.mxu0 0
    %588 = vmatprep.subr.bf16.mxu0 0
    %589 = vmatpush1.bf16.msra.mxu0 0
    %590 = vmatprep.subr.bf16.mxu0 0
    %591 = vmatpush1.bf16.msra.mxu0 0
    %592 = vmatprep.subr.bf16.mxu0 0
    %593 = vmatpush1.bf16.msra.mxu0 0
    %594 = vmatprep.subr.bf16.mxu0 0
    %595 = vmatpush1.bf16.msra.mxu0 0
    %596 = vmatprep.mubr.bf16.mxu0 0
    %597 = vmatmul.mubr.bf16.gmra.mrb[0].mxu0 %v562
    %v598 = vpop.f32.mrb[0].mxu0
    %v599 = vadd.f32 0.0, %v598
    %v600 = vpop.f32.mrb[0].mxu0
    %v601 = vpop.f32.mrb[0].mxu0
    %v602 = vadd.f32 0.0, %v601
    %v603 = vpop.f32.mrb[0].mxu0
    %604 = vdwg.mxu0
    %v607 = vunpack.c.l.b16 %v327
    %v608 = vunpack.c.l.b16 %v328
    %v609 = vpack.c.b16 %v608, %v607
    %v612 = vsel %vm106, %v326, 0
    %614 = vmatprep.subr.bf16.mxu0 0
    %615 = vmatpush1.bf16.msra.mxu0 %v609
    %616 = vmatprep.subr.bf16.mxu0 0
    %617 = vmatpush1.bf16.msra.mxu0 0
    %618 = vmatprep.subr.bf16.mxu0 0
    %619 = vmatpush1.bf16.msra.mxu0 0
    %620 = vmatprep.subr.bf16.mxu0 0
    %621 = vmatpush1.bf16.msra.mxu0 0
    %622 = vmatprep.subr.bf16.mxu0 0
    %623 = vmatpush1.bf16.msra.mxu0 0
    %624 = vmatprep.subr.bf16.mxu0 0
    %625 = vmatpush1.bf16.msra.mxu0 0
    %626 = vmatprep.subr.bf16.mxu0 0
    %627 = vmatpush1.bf16.msra.mxu0 0
    %628 = vmatprep.subr.bf16.mxu0 0
    %629 = vmatpush1.bf16.msra.mxu0 0
    %630 = vmatprep.subr.bf16.mxu0 0
    %631 = vmatpush1.bf16.msra.mxu0 0
    %632 = vmatprep.subr.bf16.mxu0 0
    %633 = vmatpush1.bf16.msra.mxu0 0
    %634 = vmatprep.subr.bf16.mxu0 0
    %635 = vmatpush1.bf16.msra.mxu0 0
    %636 = vmatprep.subr.bf16.mxu0 0
    %637 = vmatpush1.bf16.msra.mxu0 0
    %638 = vmatprep.subr.bf16.mxu0 0
    %639 = vmatpush1.bf16.msra.mxu0 0
    %640 = vmatprep.subr.bf16.mxu0 0
    %641 = vmatpush1.bf16.msra.mxu0 0
    %642 = vmatprep.subr.bf16.mxu0 0
    %643 = vmatpush1.bf16.msra.mxu0 0
    %644 = vmatprep.subr.bf16.mxu0 0
    %645 = vmatpush1.bf16.msra.mxu0 0
    %646 = vmatprep.mubr.bf16.mxu0 0
    %647 = vmatmul.mubr.bf16.gmra.mrb[0].mxu0 %v612
    %v648 = vpop.f32.mrb[0].mxu0
    %v649 = vadd.f32 %v599, %v648
    %v650 = vpop.f32.mrb[0].mxu0
    %v651 = vpop.f32.mrb[0].mxu0
    %v652 = vadd.f32 %v602, %v651
    %v653 = vpop.f32.mrb[0].mxu0
    %654 = vdwg.mxu0
    %v655 = vlaneseq
    %v656 = vshrl.u32 %v655, 7
    %v657 = vsub.s32 1, %v656
    %v658 = vrot.slane %v34, %v657
    %v659 = vadd.f32 %v649, %v658
    %v660 = vadd.f32 %v652, %v658
    %v661 = vadd.f32 %v32, %v659
    %v662 = vadd.f32 %v33, %v660
    %v663 = vsel %vm56, %v661, 0.0
    %664 = vadd.xlane.f32.xlu0 %v663
    %v665 = vpop.xlane.xlu0 %664
    %v666 = vsel %vm56, %v662, 0.0
    %667 = vadd.xlane.f32.xlu0 %v666
    %v668 = vpop.xlane.xlu0 %667
    %v669 = vrcp.pop 32.0
    %v670 = vmul.f32 %v665, %v669
    %v671 = vmul.f32 %v668, %v669
    %v672 = vsub.f32 %v661, %v670
    %v673 = vsub.f32 %v662, %v671
    %v674 = vmul.f32 %v672, %v672
    %v675 = vmul.f32 %v673, %v673
    %v676 = vsel %vm56, %v674, 0.0
    %677 = vadd.xlane.f32.xlu0 %v676
    %v678 = vpop.xlane.xlu0 %677
    %v679 = vsel %vm56, %v675, 0.0
    %680 = vadd.xlane.f32.xlu0 %v679
    %v681 = vpop.xlane.xlu0 %680
    %v682 = vmul.f32 %v678, %v669
    %v683 = vmul.f32 %v681, %v669
    %v684 = vadd.f32 %v682, 1e-05
    %v685 = vadd.f32 %v683, 1e-05
    %v686 = vrsqrt.pop %v684
    %v687 = vrsqrt.pop %v685
    %v688 = vmul.f32 %v672, %v686
    %v689 = vmul.f32 %v673, %v687
    %v690 = vlaneseq
    %v691 = vshrl.u32 %v690, 7
    %v692 = vsub.s32 2, %v691
    %v693 = vrot.slane %v34, %v692
    %v694 = vmul.f32 %v688, %v693
    %v695 = vmul.f32 %v689, %v693
    %v696 = vlaneseq
    %v697 = vshrl.u32 %v696, 7
    %v698 = vsub.s32 3, %v697
    %v699 = vrot.slane %v34, %v698
    %v700 = vadd.f32 %v694, %v699
    %v701 = vadd.f32 %v695, %v699
    %v702 = vpack.c.bf16 %v701, %v700
    %v703 = vld [vmem:[%s4] sm:$0xf]
    %v704 = vld [vmem:[%s4 + $0x4] sm:$0xf]
    %v705 = vld [vmem:[%s4 + $0x8] sm:$0xf]
    %v706 = vld [vmem:[%s4 + $0xc] sm:$0xf]
    %v707 = vlaneseq
    %v708 = vshrl.u32 %v707, 7
    %v709 = vsub.s32 4, %v708
    %v710 = vrot.slane %v34, %v709
    %v715 = vunpack.c.l.b16 %v703
    %v716 = vunpack.c.l.b16 %v704
    %v717 = vunpack.c.l.b16 %v705
    %v718 = vunpack.c.l.b16 %v706
    %v719 = vpack.c.b16 %v716, %v715
    %v720 = vpack.c.b16 %v718, %v717
    %v724 = vsel %vm56, %v702, 0
    %726 = vmatprep.subr.bf16.mxu0 0
    %727 = vmatpush1.bf16.msra.mxu0 %v719
    %728 = vmatprep.subr.bf16.mxu0 0
    %729 = vmatpush1.bf16.msra.mxu0 %v720
    %730 = vmatprep.subr.bf16.mxu0 0
    %731 = vmatpush1.bf16.msra.mxu0 0
    %732 = vmatprep.subr.bf16.mxu0 0
    %733 = vmatpush1.bf16.msra.mxu0 0
    %734 = vmatprep.subr.bf16.mxu0 0
    %735 = vmatpush1.bf16.msra.mxu0 0
    %736 = vmatprep.subr.bf16.mxu0 0
    %737 = vmatpush1.bf16.msra.mxu0 0
    %738 = vmatprep.subr.bf16.mxu0 0
    %739 = vmatpush1.bf16.msra.mxu0 0
    %740 = vmatprep.subr.bf16.mxu0 0
    %741 = vmatpush1.bf16.msra.mxu0 0
    %742 = vmatprep.subr.bf16.mxu0 0
    %743 = vmatpush1.bf16.msra.mxu0 0
    %744 = vmatprep.subr.bf16.mxu0 0
    %745 = vmatpush1.bf16.msra.mxu0 0
    %746 = vmatprep.subr.bf16.mxu0 0
    %747 = vmatpush1.bf16.msra.mxu0 0
    %748 = vmatprep.subr.bf16.mxu0 0
    %749 = vmatpush1.bf16.msra.mxu0 0
    %750 = vmatprep.subr.bf16.mxu0 0
    %751 = vmatpush1.bf16.msra.mxu0 0
    %752 = vmatprep.subr.bf16.mxu0 0
    %753 = vmatpush1.bf16.msra.mxu0 0
    %754 = vmatprep.subr.bf16.mxu0 0
    %755 = vmatpush1.bf16.msra.mxu0 0
    %756 = vmatprep.subr.bf16.mxu0 0
    %757 = vmatpush1.bf16.msra.mxu0 0
    %758 = vmatprep.mubr.bf16.mxu0 0
    %759 = vmatmul.mubr.bf16.gmra.mrb[0].mxu0 %v724
    %v760 = vpop.f32.mrb[0].mxu0
    %v761 = vadd.f32 %v710, %v760
    %v762 = vpop.f32.mrb[0].mxu0
    %v763 = vpop.f32.mrb[0].mxu0
    %v764 = vadd.f32 %v710, %v763
    %v765 = vpop.f32.mrb[0].mxu0
    %766 = vdwg.mxu0
    %v767 = vmax.f32 %v761, 0.0
    %v768 = vmax.f32 %v764, 0.0
    %v769 = vpack.c.bf16 %v768, %v767
    %v770 = vld [vmem:[%s5] sm:$0xf]
    %v771 = vld [vmem:[%s5 + $0x4] sm:$0xf]
    %v772 = vld [vmem:[%s5 + $0x8] sm:$0xf]
    %v773 = vld [vmem:[%s5 + $0xc] sm:$0xf]
    %v774 = vld [vmem:[%s5 + $0x10] sm:$0xf]
    %v775 = vld [vmem:[%s5 + $0x14] sm:$0xf]
    %v776 = vld [vmem:[%s5 + $0x18] sm:$0xf]
    %v777 = vld [vmem:[%s5 + $0x1c] sm:$0xf]
    %v778 = vld [vmem:[%s5 + $0x20] sm:$0xf]
    %v779 = vld [vmem:[%s5 + $0x24] sm:$0xf]
    %v780 = vld [vmem:[%s5 + $0x28] sm:$0xf]
    %v781 = vld [vmem:[%s5 + $0x2c] sm:$0xf]
    %v782 = vld [vmem:[%s5 + $0x30] sm:$0xf]
    %v783 = vld [vmem:[%s5 + $0x34] sm:$0xf]
    %v784 = vld [vmem:[%s5 + $0x38] sm:$0xf]
    %v785 = vld [vmem:[%s5 + $0x3c] sm:$0xf]
    %v786 = vlaneseq
    %v787 = vshrl.u32 %v786, 7
    %v788 = vsub.s32 5, %v787
    %v789 = vrot.slane %v34, %v788
    %v806 = vunpack.c.l.b16 %v770
    %v807 = vunpack.c.l.b16 %v771
    %v808 = vunpack.c.l.b16 %v772
    %v809 = vunpack.c.l.b16 %v773
    %v810 = vunpack.c.l.b16 %v774
    %v811 = vunpack.c.l.b16 %v775
    %v812 = vunpack.c.l.b16 %v776
    %v813 = vunpack.c.l.b16 %v777
    %v814 = vunpack.c.l.b16 %v778
    %v815 = vunpack.c.l.b16 %v779
    %v816 = vunpack.c.l.b16 %v780
    %v817 = vunpack.c.l.b16 %v781
    %v818 = vunpack.c.l.b16 %v782
    %v819 = vunpack.c.l.b16 %v783
    %v820 = vunpack.c.l.b16 %v784
    %v821 = vunpack.c.l.b16 %v785
    %v822 = vpack.c.b16 %v807, %v806
    %v823 = vpack.c.b16 %v809, %v808
    %v824 = vpack.c.b16 %v811, %v810
    %v825 = vpack.c.b16 %v813, %v812
    %v826 = vpack.c.b16 %v815, %v814
    %v827 = vpack.c.b16 %v817, %v816
    %v828 = vpack.c.b16 %v819, %v818
    %v829 = vpack.c.b16 %v821, %v820
    %838 = vmatprep.subr.bf16.mxu0 0
    %839 = vmatpush1.bf16.msra.mxu0 %v822
    %840 = vmatprep.subr.bf16.mxu0 0
    %841 = vmatpush1.bf16.msra.mxu0 %v823
    %842 = vmatprep.subr.bf16.mxu0 0
    %843 = vmatpush1.bf16.msra.mxu0 %v824
    %844 = vmatprep.subr.bf16.mxu0 0
    %845 = vmatpush1.bf16.msra.mxu0 %v825
    %846 = vmatprep.subr.bf16.mxu0 0
    %847 = vmatpush1.bf16.msra.mxu0 %v826
    %848 = vmatprep.subr.bf16.mxu0 0
    %849 = vmatpush1.bf16.msra.mxu0 %v827
    %850 = vmatprep.subr.bf16.mxu0 0
    %851 = vmatpush1.bf16.msra.mxu0 %v828
    %852 = vmatprep.subr.bf16.mxu0 0
    %853 = vmatpush1.bf16.msra.mxu0 %v829
    %854 = vmatprep.subr.bf16.mxu0 0
    %855 = vmatpush1.bf16.msra.mxu0 0
    %856 = vmatprep.subr.bf16.mxu0 0
    %857 = vmatpush1.bf16.msra.mxu0 0
    %858 = vmatprep.subr.bf16.mxu0 0
    %859 = vmatpush1.bf16.msra.mxu0 0
    %860 = vmatprep.subr.bf16.mxu0 0
    %861 = vmatpush1.bf16.msra.mxu0 0
    %862 = vmatprep.subr.bf16.mxu0 0
    %863 = vmatpush1.bf16.msra.mxu0 0
    %864 = vmatprep.subr.bf16.mxu0 0
    %865 = vmatpush1.bf16.msra.mxu0 0
    %866 = vmatprep.subr.bf16.mxu0 0
    %867 = vmatpush1.bf16.msra.mxu0 0
    %868 = vmatprep.subr.bf16.mxu0 0
    %869 = vmatpush1.bf16.msra.mxu0 0
    %870 = vmatprep.mubr.bf16.mxu0 0
    %871 = vmatmul.mubr.bf16.gmra.mrb[0].mxu0 %v769
    %v872 = vpop.f32.mrb[0].mxu0
    %v873 = vadd.f32 %v789, %v872
    %v874 = vpop.f32.mrb[0].mxu0
    %v875 = vpop.f32.mrb[0].mxu0
    %v876 = vadd.f32 %v789, %v875
    %v877 = vpop.f32.mrb[0].mxu0
    %878 = vdwg.mxu0
    %v879 = vadd.f32 %v700, %v873
    %v880 = vadd.f32 %v701, %v876
    %v881 = vsel %vm56, %v879, 0.0
    %882 = vadd.xlane.f32.xlu0 %v881
    %v883 = vpop.xlane.xlu0 %882
    %v884 = vsel %vm56, %v880, 0.0
    %885 = vadd.xlane.f32.xlu0 %v884
    %v886 = vpop.xlane.xlu0 %885
    %v887 = vmul.f32 %v883, %v669
    %v888 = vmul.f32 %v886, %v669
    %v889 = vsub.f32 %v879, %v887
    %v890 = vsub.f32 %v880, %v888
    %v891 = vmul.f32 %v889, %v889
    %v892 = vmul.f32 %v890, %v890
    %v893 = vsel %vm56, %v891, 0.0
    %894 = vadd.xlane.f32.xlu0 %v893
    %v895 = vpop.xlane.xlu0 %894
    %v896 = vsel %vm56, %v892, 0.0
    %897 = vadd.xlane.f32.xlu0 %v896
    %v898 = vpop.xlane.xlu0 %897
    %v899 = vmul.f32 %v895, %v669
    %v900 = vmul.f32 %v898, %v669
    %v901 = vadd.f32 %v899, 1e-05
    %v902 = vadd.f32 %v900, 1e-05
    %v903 = vrsqrt.pop %v901
    %v904 = vrsqrt.pop %v902
    %v905 = vmul.f32 %v889, %v903
    %v906 = vmul.f32 %v890, %v904
    %v907 = vlaneseq
    %v908 = vshrl.u32 %v907, 7
    %v909 = vsub.s32 6, %v908
    %v910 = vrot.slane %v34, %v909
    %v911 = vmul.f32 %v905, %v910
    %v912 = vmul.f32 %v906, %v910
    %v913 = vlaneseq
    %v914 = vshrl.u32 %v913, 7
    %v915 = vsub.s32 7, %v914
    %v916 = vrot.slane %v34, %v915
    %v917 = vadd.f32 %v911, %v916
    %v918 = vadd.f32 %v912, %v916
    %s919 = scalar_lea.vmem %s6, 8
    %v920 = vld [vmem:[%s919] sm:$0xff]
    %v921 = vpack.c.bf16 %v918, %v917
    %s922 = scalar_lea.vmem %s2, 16
    %v923 = vld [vmem:[%s922] sm:$0xf]
    %v924 = vld [vmem:[%s922 + $0x4] sm:$0xf]
    %v925 = vld [vmem:[%s922 + $0x8] sm:$0xf]
    %v926 = vld [vmem:[%s922 + $0xc] sm:$0xf]
    %v927 = vlaneseq
    %v928 = vshrl.u32 %v927, 7
    %v929 = vsub.s32 0, %v928
    %v930 = vrot.slane %v920, %v929
    %v935 = vunpack.c.l.b16 %v923
    %v936 = vunpack.c.l.b16 %v924
    %v937 = vunpack.c.l.b16 %v925
    %v938 = vunpack.c.l.b16 %v926
    %v939 = vpack.c.b16 %v936, %v935
    %v940 = vpack.c.b16 %v938, %v937
    %v944 = vsel %vm56, %v921, 0
    %946 = vmatprep.subr.bf16.mxu0 0
    %947 = vmatpush1.bf16.msra.mxu0 %v939
    %948 = vmatprep.subr.bf16.mxu0 0
    %949 = vmatpush1.bf16.msra.mxu0 %v940
    %950 = vmatprep.subr.bf16.mxu0 0
    %951 = vmatpush1.bf16.msra.mxu0 0
    %952 = vmatprep.subr.bf16.mxu0 0
    %953 = vmatpush1.bf16.msra.mxu0 0
    %954 = vmatprep.subr.bf16.mxu0 0
    %955 = vmatpush1.bf16.msra.mxu0 0
    %956 = vmatprep.subr.bf16.mxu0 0
    %957 = vmatpush1.bf16.msra.mxu0 0
    %958 = vmatprep.subr.bf16.mxu0 0
    %959 = vmatpush1.bf16.msra.mxu0 0
    %960 = vmatprep.subr.bf16.mxu0 0
    %961 = vmatpush1.bf16.msra.mxu0 0
    %962 = vmatprep.subr.bf16.mxu0 0
    %963 = vmatpush1.bf16.msra.mxu0 0
    %964 = vmatprep.subr.bf16.mxu0 0
    %965 = vmatpush1.bf16.msra.mxu0 0
    %966 = vmatprep.subr.bf16.mxu0 0
    %967 = vmatpush1.bf16.msra.mxu0 0
    %968 = vmatprep.subr.bf16.mxu0 0
    %969 = vmatpush1.bf16.msra.mxu0 0
    %970 = vmatprep.subr.bf16.mxu0 0
    %971 = vmatpush1.bf16.msra.mxu0 0
    %972 = vmatprep.subr.bf16.mxu0 0
    %973 = vmatpush1.bf16.msra.mxu0 0
    %974 = vmatprep.subr.bf16.mxu0 0
    %975 = vmatpush1.bf16.msra.mxu0 0
    %976 = vmatprep.subr.bf16.mxu0 0
    %977 = vmatpush1.bf16.msra.mxu0 0
    %978 = vmatprep.mubr.bf16.mxu0 0
    %979 = vmatmul.mubr.bf16.gmra.mrb[0].mxu0 %v944
    %v980 = vpop.f32.mrb[0].mxu0
    %v981 = vadd.f32 %v930, %v980
    %v982 = vpop.f32.mrb[0].mxu0
    %v983 = vpop.f32.mrb[0].mxu0
    %v984 = vadd.f32 %v930, %v983
    %v985 = vpop.f32.mrb[0].mxu0
    %986 = vdwg.mxu0
    %v987 = vpack.c.bf16 %v981, %v981
    %v988 = vpack.c.bf16 %v984, %v984
    %990 = vrot.lane.b32.xlu0 %v987, 96
    %v991 = vpop.permute.xlu0 %990
    %v993 = vsel %vm106, %v987, 0
    %v996 = vsel %vm106, %v991, 0
    %998 = vmatprep.subr.bf16.mxu0 0
    %999 = vmatpush1.bf16.xpose.msra.mxu0 %v996
    %1000 = vmatprep.subr.bf16.mxu0 0
    %1001 = vmatpush1.bf16.xpose.msra.mxu0 0
    %1002 = vmatprep.subr.bf16.mxu0 0
    %1003 = vmatpush1.bf16.xpose.msra.mxu0 0
    %1004 = vmatprep.subr.bf16.mxu0 0
    %1005 = vmatpush1.bf16.xpose.msra.mxu0 0
    %1006 = vmatprep.subr.bf16.mxu0 0
    %1007 = vmatpush1.bf16.xpose.msra.mxu0 0
    %1008 = vmatprep.subr.bf16.mxu0 0
    %1009 = vmatpush1.bf16.xpose.msra.mxu0 0
    %1010 = vmatprep.subr.bf16.mxu0 0
    %1011 = vmatpush1.bf16.xpose.msra.mxu0 0
    %1012 = vmatprep.subr.bf16.mxu0 0
    %1013 = vmatpush1.bf16.xpose.msra.mxu0 0
    %1014 = vmatprep.subr.bf16.mxu0 0
    %1015 = vmatpush1.bf16.xpose.msra.mxu0 0
    %1016 = vmatprep.subr.bf16.mxu0 0
    %1017 = vmatpush1.bf16.xpose.msra.mxu0 0
    %1018 = vmatprep.subr.bf16.mxu0 0
    %1019 = vmatpush1.bf16.xpose.msra.mxu0 0
    %1020 = vmatprep.subr.bf16.mxu0 0
    %1021 = vmatpush1.bf16.xpose.msra.mxu0 0
    %1022 = vmatprep.subr.bf16.mxu0 0
    %1023 = vmatpush1.bf16.xpose.msra.mxu0 0
    %1024 = vmatprep.subr.bf16.mxu0 0
    %1025 = vmatpush1.bf16.xpose.msra.mxu0 0
    %1026 = vmatprep.subr.bf16.mxu0 0
    %1027 = vmatpush1.bf16.xpose.msra.mxu0 0
    %1028 = vmatprep.subr.bf16.mxu0 0
    %1029 = vmatpush1.bf16.xpose.msra.mxu0 0
    %1030 = vmatprep.mubr.bf16.mxu0 0
    %1031 = vmatmul.mubr.bf16.gmra.mrb[0].mxu0 %v993
    %v1032 = vpop.f32.mrb[0].mxu0
    %v1033 = vadd.f32 0.0, %v1032
    %v1034 = vpop.f32.mrb[0].mxu0
    %v1035 = vpop.f32.mrb[0].mxu0
    %v1036 = vpop.f32.mrb[0].mxu0
    %1037 = vdwg.mxu0
    %1039 = vrot.lane.b32.xlu0 %v988, 96
    %v1040 = vpop.permute.xlu0 %1039
    %v1042 = vsel %vm106, %v988, 0
    %v1045 = vsel %vm106, %v1040, 0
    %1047 = vmatprep.subr.bf16.mxu0 0
    %1048 = vmatpush1.bf16.xpose.msra.mxu0 %v1045
    %1049 = vmatprep.subr.bf16.mxu0 0
    %1050 = vmatpush1.bf16.xpose.msra.mxu0 0
    %1051 = vmatprep.subr.bf16.mxu0 0
    %1052 = vmatpush1.bf16.xpose.msra.mxu0 0
    %1053 = vmatprep.subr.bf16.mxu0 0
    %1054 = vmatpush1.bf16.xpose.msra.mxu0 0
    %1055 = vmatprep.subr.bf16.mxu0 0
    %1056 = vmatpush1.bf16.xpose.msra.mxu0 0
    %1057 = vmatprep.subr.bf16.mxu0 0
    %1058 = vmatpush1.bf16.xpose.msra.mxu0 0
    %1059 = vmatprep.subr.bf16.mxu0 0
    %1060 = vmatpush1.bf16.xpose.msra.mxu0 0
    %1061 = vmatprep.subr.bf16.mxu0 0
    %1062 = vmatpush1.bf16.xpose.msra.mxu0 0
    %1063 = vmatprep.subr.bf16.mxu0 0
    %1064 = vmatpush1.bf16.xpose.msra.mxu0 0
    %1065 = vmatprep.subr.bf16.mxu0 0
    %1066 = vmatpush1.bf16.xpose.msra.mxu0 0
    %1067 = vmatprep.subr.bf16.mxu0 0
    %1068 = vmatpush1.bf16.xpose.msra.mxu0 0
    %1069 = vmatprep.subr.bf16.mxu0 0
    %1070 = vmatpush1.bf16.xpose.msra.mxu0 0
    %1071 = vmatprep.subr.bf16.mxu0 0
    %1072 = vmatpush1.bf16.xpose.msra.mxu0 0
    %1073 = vmatprep.subr.bf16.mxu0 0
    %1074 = vmatpush1.bf16.xpose.msra.mxu0 0
    %1075 = vmatprep.subr.bf16.mxu0 0
    %1076 = vmatpush1.bf16.xpose.msra.mxu0 0
    %1077 = vmatprep.subr.bf16.mxu0 0
    %1078 = vmatpush1.bf16.xpose.msra.mxu0 0
    %1079 = vmatprep.mubr.bf16.mxu0 0
    %1080 = vmatmul.mubr.bf16.gmra.mrb[0].mxu0 %v1042
    %v1081 = vpop.f32.mrb[0].mxu0
    %v1082 = vadd.f32 0.0, %v1081
    %v1083 = vpop.f32.mrb[0].mxu0
    %v1084 = vpop.f32.mrb[0].mxu0
    %v1085 = vpop.f32.mrb[0].mxu0
    %1086 = vdwg.mxu0
    %v1087 = vmul.f32 %v1033, 0.25
    %v1088 = vmul.f32 %v1082, 0.25
    %v1089 = vsel %vm204, %v1087, -inf
    %1090 = vmax.xlane.f32.xlu0 %v1089
    %v1091 = vpop.xlane.xlu0 %1090
    %v1092 = vsel %vm204, %v1088, -inf
    %1093 = vmax.xlane.f32.xlu0 %v1092
    %v1094 = vpop.xlane.xlu0 %1093
    %v1095 = vsub.f32 %v1087, %v1091
    %v1096 = vsub.f32 %v1088, %v1094
    %v1097 = vmul.f32 %v1095, 1.442695
    %v1098 = vpow.pop %v1097
    %v1099 = vmul.f32 %v1096, 1.442695
    %v1100 = vpow.pop %v1099
    %v1101 = vsel %vm204, %v1098, 0.0
    %1102 = vadd.xlane.f32.xlu0 %v1101
    %v1103 = vpop.xlane.xlu0 %1102
    %v1104 = vsel %vm204, %v1100, 0.0
    %1105 = vadd.xlane.f32.xlu0 %v1104
    %v1106 = vpop.xlane.xlu0 %1105
    %v1107 = vrcp.pop %v1103
    %v1108 = vrcp.pop %v1106
    %v1109 = vmul.f32 %v1098, %v1107
    %v1110 = vmul.f32 %v1100, %v1108
    %v1111 = vpack.c.bf16 %v1109, %v1109
    %v1112 = vpack.c.bf16 %v1110, %v1110
    %1113 = vrot.lane.b32.xlu0 %v987, 64
    %v1114 = vpop.permute.xlu0 %1113
    %v1116 = vsel %vm204, %v1111, 0
    %v1119 = vsel %vm234, %v1114, 0
    %1121 = vmatprep.subr.bf16.mxu0 0
    %1122 = vmatpush1.bf16.msra.mxu0 %v1119
    %1123 = vmatprep.subr.bf16.mxu0 0
    %1124 = vmatpush1.bf16.msra.mxu0 0
    %1125 = vmatprep.subr.bf16.mxu0 0
    %1126 = vmatpush1.bf16.msra.mxu0 0
    %1127 = vmatprep.subr.bf16.mxu0 0
    %1128 = vmatpush1.bf16.msra.mxu0 0
    %1129 = vmatprep.subr.bf16.mxu0 0
    %1130 = vmatpush1.bf16.msra.mxu0 0
    %1131 = vmatprep.subr.bf16.mxu0 0
    %1132 = vmatpush1.bf16.msra.mxu0 0
    %1133 = vmatprep.subr.bf16.mxu0 0
    %1134 = vmatpush1.bf16.msra.mxu0 0
    %1135 = vmatprep.subr.bf16.mxu0 0
    %1136 = vmatpush1.bf16.msra.mxu0 0
    %1137 = vmatprep.subr.bf16.mxu0 0
    %1138 = vmatpush1.bf16.msra.mxu0 0
    %1139 = vmatprep.subr.bf16.mxu0 0
    %1140 = vmatpush1.bf16.msra.mxu0 0
    %1141 = vmatprep.subr.bf16.mxu0 0
    %1142 = vmatpush1.bf16.msra.mxu0 0
    %1143 = vmatprep.subr.bf16.mxu0 0
    %1144 = vmatpush1.bf16.msra.mxu0 0
    %1145 = vmatprep.subr.bf16.mxu0 0
    %1146 = vmatpush1.bf16.msra.mxu0 0
    %1147 = vmatprep.subr.bf16.mxu0 0
    %1148 = vmatpush1.bf16.msra.mxu0 0
    %1149 = vmatprep.subr.bf16.mxu0 0
    %1150 = vmatpush1.bf16.msra.mxu0 0
    %1151 = vmatprep.subr.bf16.mxu0 0
    %1152 = vmatpush1.bf16.msra.mxu0 0
    %1153 = vmatprep.mubr.bf16.mxu0 0
    %1154 = vmatmul.mubr.bf16.gmra.mrb[0].mxu0 %v1116
    %v1155 = vpop.f32.mrb[0].mxu0
    %v1156 = vadd.f32 0.0, %v1155
    %v1157 = vpop.f32.mrb[0].mxu0
    %v1158 = vpop.f32.mrb[0].mxu0
    %v1159 = vpop.f32.mrb[0].mxu0
    %1160 = vdwg.mxu0
    %1161 = vrot.lane.b32.xlu0 %v988, 64
    %v1162 = vpop.permute.xlu0 %1161
    %v1164 = vsel %vm204, %v1112, 0
    %v1167 = vsel %vm234, %v1162, 0
    %1169 = vmatprep.subr.bf16.mxu0 0
    %1170 = vmatpush1.bf16.msra.mxu0 %v1167
    %1171 = vmatprep.subr.bf16.mxu0 0
    %1172 = vmatpush1.bf16.msra.mxu0 0
    %1173 = vmatprep.subr.bf16.mxu0 0
    %1174 = vmatpush1.bf16.msra.mxu0 0
    %1175 = vmatprep.subr.bf16.mxu0 0
    %1176 = vmatpush1.bf16.msra.mxu0 0
    %1177 = vmatprep.subr.bf16.mxu0 0
    %1178 = vmatpush1.bf16.msra.mxu0 0
    %1179 = vmatprep.subr.bf16.mxu0 0
    %1180 = vmatpush1.bf16.msra.mxu0 0
    %1181 = vmatprep.subr.bf16.mxu0 0
    %1182 = vmatpush1.bf16.msra.mxu0 0
    %1183 = vmatprep.subr.bf16.mxu0 0
    %1184 = vmatpush1.bf16.msra.mxu0 0
    %1185 = vmatprep.subr.bf16.mxu0 0
    %1186 = vmatpush1.bf16.msra.mxu0 0
    %1187 = vmatprep.subr.bf16.mxu0 0
    %1188 = vmatpush1.bf16.msra.mxu0 0
    %1189 = vmatprep.subr.bf16.mxu0 0
    %1190 = vmatpush1.bf16.msra.mxu0 0
    %1191 = vmatprep.subr.bf16.mxu0 0
    %1192 = vmatpush1.bf16.msra.mxu0 0
    %1193 = vmatprep.subr.bf16.mxu0 0
    %1194 = vmatpush1.bf16.msra.mxu0 0
    %1195 = vmatprep.subr.bf16.mxu0 0
    %1196 = vmatpush1.bf16.msra.mxu0 0
    %1197 = vmatprep.subr.bf16.mxu0 0
    %1198 = vmatpush1.bf16.msra.mxu0 0
    %1199 = vmatprep.subr.bf16.mxu0 0
    %1200 = vmatpush1.bf16.msra.mxu0 0
    %1201 = vmatprep.mubr.bf16.mxu0 0
    %1202 = vmatmul.mubr.bf16.gmra.mrb[0].mxu0 %v1164
    %v1203 = vpop.f32.mrb[0].mxu0
    %v1204 = vadd.f32 0.0, %v1203
    %v1205 = vpop.f32.mrb[0].mxu0
    %v1206 = vpop.f32.mrb[0].mxu0
    %v1207 = vpop.f32.mrb[0].mxu0
    %1208 = vdwg.mxu0
    %v1209 = vpack.c.bf16 %v1204, %v1156
    %s1210 = scalar_lea.vmem %s3, 16
    %v1211 = vld [vmem:[%s1210] sm:$0xf]
    %v1212 = vld [vmem:[%s1210 + $0x4] sm:$0xf]
    %1213 = vrot.lane.b32.xlu0 %v987, 112
    %v1214 = vpop.permute.xlu0 %1213
    %1215 = vrot.lane.b32.xlu0 %v987, 80
    %v1216 = vpop.permute.xlu0 %1215
    %v1218 = vsel %vm106, %v1214, 0
    %v1221 = vsel %vm106, %v1216, 0
    %1223 = vmatprep.subr.bf16.mxu0 0
    %1224 = vmatpush1.bf16.xpose.msra.mxu0 %v1221
    %1225 = vmatprep.subr.bf16.mxu0 0
    %1226 = vmatpush1.bf16.xpose.msra.mxu0 0
    %1227 = vmatprep.subr.bf16.mxu0 0
    %1228 = vmatpush1.bf16.xpose.msra.mxu0 0
    %1229 = vmatprep.subr.bf16.mxu0 0
    %1230 = vmatpush1.bf16.xpose.msra.mxu0 0
    %1231 = vmatprep.subr.bf16.mxu0 0
    %1232 = vmatpush1.bf16.xpose.msra.mxu0 0
    %1233 = vmatprep.subr.bf16.mxu0 0
    %1234 = vmatpush1.bf16.xpose.msra.mxu0 0
    %1235 = vmatprep.subr.bf16.mxu0 0
    %1236 = vmatpush1.bf16.xpose.msra.mxu0 0
    %1237 = vmatprep.subr.bf16.mxu0 0
    %1238 = vmatpush1.bf16.xpose.msra.mxu0 0
    %1239 = vmatprep.subr.bf16.mxu0 0
    %1240 = vmatpush1.bf16.xpose.msra.mxu0 0
    %1241 = vmatprep.subr.bf16.mxu0 0
    %1242 = vmatpush1.bf16.xpose.msra.mxu0 0
    %1243 = vmatprep.subr.bf16.mxu0 0
    %1244 = vmatpush1.bf16.xpose.msra.mxu0 0
    %1245 = vmatprep.subr.bf16.mxu0 0
    %1246 = vmatpush1.bf16.xpose.msra.mxu0 0
    %1247 = vmatprep.subr.bf16.mxu0 0
    %1248 = vmatpush1.bf16.xpose.msra.mxu0 0
    %1249 = vmatprep.subr.bf16.mxu0 0
    %1250 = vmatpush1.bf16.xpose.msra.mxu0 0
    %1251 = vmatprep.subr.bf16.mxu0 0
    %1252 = vmatpush1.bf16.xpose.msra.mxu0 0
    %1253 = vmatprep.subr.bf16.mxu0 0
    %1254 = vmatpush1.bf16.xpose.msra.mxu0 0
    %1255 = vmatprep.mubr.bf16.mxu0 0
    %1256 = vmatmul.mubr.bf16.gmra.mrb[0].mxu0 %v1218
    %v1257 = vpop.f32.mrb[0].mxu0
    %v1258 = vadd.f32 0.0, %v1257
    %v1259 = vpop.f32.mrb[0].mxu0
    %v1260 = vpop.f32.mrb[0].mxu0
    %v1261 = vpop.f32.mrb[0].mxu0
    %1262 = vdwg.mxu0
    %1263 = vrot.lane.b32.xlu0 %v988, 112
    %v1264 = vpop.permute.xlu0 %1263
    %1265 = vrot.lane.b32.xlu0 %v988, 80
    %v1266 = vpop.permute.xlu0 %1265
    %v1268 = vsel %vm106, %v1264, 0
    %v1271 = vsel %vm106, %v1266, 0
    %1273 = vmatprep.subr.bf16.mxu0 0
    %1274 = vmatpush1.bf16.xpose.msra.mxu0 %v1271
    %1275 = vmatprep.subr.bf16.mxu0 0
    %1276 = vmatpush1.bf16.xpose.msra.mxu0 0
    %1277 = vmatprep.subr.bf16.mxu0 0
    %1278 = vmatpush1.bf16.xpose.msra.mxu0 0
    %1279 = vmatprep.subr.bf16.mxu0 0
    %1280 = vmatpush1.bf16.xpose.msra.mxu0 0
    %1281 = vmatprep.subr.bf16.mxu0 0
    %1282 = vmatpush1.bf16.xpose.msra.mxu0 0
    %1283 = vmatprep.subr.bf16.mxu0 0
    %1284 = vmatpush1.bf16.xpose.msra.mxu0 0
    %1285 = vmatprep.subr.bf16.mxu0 0
    %1286 = vmatpush1.bf16.xpose.msra.mxu0 0
    %1287 = vmatprep.subr.bf16.mxu0 0
    %1288 = vmatpush1.bf16.xpose.msra.mxu0 0
    %1289 = vmatprep.subr.bf16.mxu0 0
    %1290 = vmatpush1.bf16.xpose.msra.mxu0 0
    %1291 = vmatprep.subr.bf16.mxu0 0
    %1292 = vmatpush1.bf16.xpose.msra.mxu0 0
    %1293 = vmatprep.subr.bf16.mxu0 0
    %1294 = vmatpush1.bf16.xpose.msra.mxu0 0
    %1295 = vmatprep.subr.bf16.mxu0 0
    %1296 = vmatpush1.bf16.xpose.msra.mxu0 0
    %1297 = vmatprep.subr.bf16.mxu0 0
    %1298 = vmatpush1.bf16.xpose.msra.mxu0 0
    %1299 = vmatprep.subr.bf16.mxu0 0
    %1300 = vmatpush1.bf16.xpose.msra.mxu0 0
    %1301 = vmatprep.subr.bf16.mxu0 0
    %1302 = vmatpush1.bf16.xpose.msra.mxu0 0
    %1303 = vmatprep.subr.bf16.mxu0 0
    %1304 = vmatpush1.bf16.xpose.msra.mxu0 0
    %1305 = vmatprep.mubr.bf16.mxu0 0
    %1306 = vmatmul.mubr.bf16.gmra.mrb[0].mxu0 %v1268
    %v1307 = vpop.f32.mrb[0].mxu0
    %v1308 = vadd.f32 0.0, %v1307
    %v1309 = vpop.f32.mrb[0].mxu0
    %v1310 = vpop.f32.mrb[0].mxu0
    %v1311 = vpop.f32.mrb[0].mxu0
    %1312 = vdwg.mxu0
    %v1313 = vmul.f32 %v1258, 0.25
    %v1314 = vmul.f32 %v1308, 0.25
    %v1315 = vsel %vm204, %v1313, -inf
    %1316 = vmax.xlane.f32.xlu0 %v1315
    %v1317 = vpop.xlane.xlu0 %1316
    %v1318 = vsel %vm204, %v1314, -inf
    %1319 = vmax.xlane.f32.xlu0 %v1318
    %v1320 = vpop.xlane.xlu0 %1319
    %v1321 = vsub.f32 %v1313, %v1317
    %v1322 = vsub.f32 %v1314, %v1320
    %v1323 = vmul.f32 %v1321, 1.442695
    %v1324 = vpow.pop %v1323
    %v1325 = vmul.f32 %v1322, 1.442695
    %v1326 = vpow.pop %v1325
    %v1327 = vsel %vm204, %v1324, 0.0
    %1328 = vadd.xlane.f32.xlu0 %v1327
    %v1329 = vpop.xlane.xlu0 %1328
    %v1330 = vsel %vm204, %v1326, 0.0
    %1331 = vadd.xlane.f32.xlu0 %v1330
    %v1332 = vpop.xlane.xlu0 %1331
    %v1333 = vrcp.pop %v1329
    %v1334 = vrcp.pop %v1332
    %v1335 = vmul.f32 %v1324, %v1333
    %v1336 = vmul.f32 %v1326, %v1334
    %v1337 = vpack.c.bf16 %v1335, %v1335
    %v1338 = vpack.c.bf16 %v1336, %v1336
    %1339 = vrot.lane.b32.xlu0 %v987, 48
    %v1340 = vpop.permute.xlu0 %1339
    %v1342 = vsel %vm204, %v1337, 0
    %v1345 = vsel %vm234, %v1340, 0
    %1347 = vmatprep.subr.bf16.mxu0 0
    %1348 = vmatpush1.bf16.msra.mxu0 %v1345
    %1349 = vmatprep.subr.bf16.mxu0 0
    %1350 = vmatpush1.bf16.msra.mxu0 0
    %1351 = vmatprep.subr.bf16.mxu0 0
    %1352 = vmatpush1.bf16.msra.mxu0 0
    %1353 = vmatprep.subr.bf16.mxu0 0
    %1354 = vmatpush1.bf16.msra.mxu0 0
    %1355 = vmatprep.subr.bf16.mxu0 0
    %1356 = vmatpush1.bf16.msra.mxu0 0
    %1357 = vmatprep.subr.bf16.mxu0 0
    %1358 = vmatpush1.bf16.msra.mxu0 0
    %1359 = vmatprep.subr.bf16.mxu0 0
    %1360 = vmatpush1.bf16.msra.mxu0 0
    %1361 = vmatprep.subr.bf16.mxu0 0
    %1362 = vmatpush1.bf16.msra.mxu0 0
    %1363 = vmatprep.subr.bf16.mxu0 0
    %1364 = vmatpush1.bf16.msra.mxu0 0
    %1365 = vmatprep.subr.bf16.mxu0 0
    %1366 = vmatpush1.bf16.msra.mxu0 0
    %1367 = vmatprep.subr.bf16.mxu0 0
    %1368 = vmatpush1.bf16.msra.mxu0 0
    %1369 = vmatprep.subr.bf16.mxu0 0
    %1370 = vmatpush1.bf16.msra.mxu0 0
    %1371 = vmatprep.subr.bf16.mxu0 0
    %1372 = vmatpush1.bf16.msra.mxu0 0
    %1373 = vmatprep.subr.bf16.mxu0 0
    %1374 = vmatpush1.bf16.msra.mxu0 0
    %1375 = vmatprep.subr.bf16.mxu0 0
    %1376 = vmatpush1.bf16.msra.mxu0 0
    %1377 = vmatprep.subr.bf16.mxu0 0
    %1378 = vmatpush1.bf16.msra.mxu0 0
    %1379 = vmatprep.mubr.bf16.mxu0 0
    %1380 = vmatmul.mubr.bf16.gmra.mrb[0].mxu0 %v1342
    %v1381 = vpop.f32.mrb[0].mxu0
    %v1382 = vadd.f32 0.0, %v1381
    %v1383 = vpop.f32.mrb[0].mxu0
    %v1384 = vpop.f32.mrb[0].mxu0
    %v1385 = vpop.f32.mrb[0].mxu0
    %1386 = vdwg.mxu0
    %1387 = vrot.lane.b32.xlu0 %v988, 48
    %v1388 = vpop.permute.xlu0 %1387
    %v1390 = vsel %vm204, %v1338, 0
    %v1393 = vsel %vm234, %v1388, 0
    %1395 = vmatprep.subr.bf16.mxu0 0
    %1396 = vmatpush1.bf16.msra.mxu0 %v1393
    %1397 = vmatprep.subr.bf16.mxu0 0
    %1398 = vmatpush1.bf16.msra.mxu0 0
    %1399 = vmatprep.subr.bf16.mxu0 0
    %1400 = vmatpush1.bf16.msra.mxu0 0
    %1401 = vmatprep.subr.bf16.mxu0 0
    %1402 = vmatpush1.bf16.msra.mxu0 0
    %1403 = vmatprep.subr.bf16.mxu0 0
    %1404 = vmatpush1.bf16.msra.mxu0 0
    %1405 = vmatprep.subr.bf16.mxu0 0
    %1406 = vmatpush1.bf16.msra.mxu0 0
    %1407 = vmatprep.subr.bf16.mxu0 0
    %1408 = vmatpush1.bf16.msra.mxu0 0
    %1409 = vmatprep.subr.bf16.mxu0 0
    %1410 = vmatpush1.bf16.msra.mxu0 0
    %1411 = vmatprep.subr.bf16.mxu0 0
    %1412 = vmatpush1.bf16.msra.mxu0 0
    %1413 = vmatprep.subr.bf16.mxu0 0
    %1414 = vmatpush1.bf16.msra.mxu0 0
    %1415 = vmatprep.subr.bf16.mxu0 0
    %1416 = vmatpush1.bf16.msra.mxu0 0
    %1417 = vmatprep.subr.bf16.mxu0 0
    %1418 = vmatpush1.bf16.msra.mxu0 0
    %1419 = vmatprep.subr.bf16.mxu0 0
    %1420 = vmatpush1.bf16.msra.mxu0 0
    %1421 = vmatprep.subr.bf16.mxu0 0
    %1422 = vmatpush1.bf16.msra.mxu0 0
    %1423 = vmatprep.subr.bf16.mxu0 0
    %1424 = vmatpush1.bf16.msra.mxu0 0
    %1425 = vmatprep.subr.bf16.mxu0 0
    %1426 = vmatpush1.bf16.msra.mxu0 0
    %1427 = vmatprep.mubr.bf16.mxu0 0
    %1428 = vmatmul.mubr.bf16.gmra.mrb[0].mxu0 %v1390
    %v1429 = vpop.f32.mrb[0].mxu0
    %v1430 = vadd.f32 0.0, %v1429
    %v1431 = vpop.f32.mrb[0].mxu0
    %v1432 = vpop.f32.mrb[0].mxu0
    %v1433 = vpop.f32.mrb[0].mxu0
    %1434 = vdwg.mxu0
    %v1435 = vpack.c.bf16 %v1430, %v1382
    %s1436 = scalar_lea.vmem %s3, 24
    %v1437 = vld [vmem:[%s1436] sm:$0xf]
    %v1438 = vld [vmem:[%s1436 + $0x4] sm:$0xf]
    %v1441 = vunpack.c.l.b16 %v1437
    %v1442 = vunpack.c.l.b16 %v1438
    %v1443 = vpack.c.b16 %v1442, %v1441
    %v1446 = vsel %vm106, %v1435, 0
    %1448 = vmatprep.subr.bf16.mxu0 0
    %1449 = vmatpush1.bf16.msra.mxu0 %v1443
    %1450 = vmatprep.subr.bf16.mxu0 0
    %1451 = vmatpush1.bf16.msra.mxu0 0
    %1452 = vmatprep.subr.bf16.mxu0 0
    %1453 = vmatpush1.bf16.msra.mxu0 0
    %1454 = vmatprep.subr.bf16.mxu0 0
    %1455 = vmatpush1.bf16.msra.mxu0 0
    %1456 = vmatprep.subr.bf16.mxu0 0
    %1457 = vmatpush1.bf16.msra.mxu0 0
    %1458 = vmatprep.subr.bf16.mxu0 0
    %1459 = vmatpush1.bf16.msra.mxu0 0
    %1460 = vmatprep.subr.bf16.mxu0 0
    %1461 = vmatpush1.bf16.msra.mxu0 0
    %1462 = vmatprep.subr.bf16.mxu0 0
    %1463 = vmatpush1.bf16.msra.mxu0 0
    %1464 = vmatprep.subr.bf16.mxu0 0
    %1465 = vmatpush1.bf16.msra.mxu0 0
    %1466 = vmatprep.subr.bf16.mxu0 0
    %1467 = vmatpush1.bf16.msra.mxu0 0
    %1468 = vmatprep.subr.bf16.mxu0 0
    %1469 = vmatpush1.bf16.msra.mxu0 0
    %1470 = vmatprep.subr.bf16.mxu0 0
    %1471 = vmatpush1.bf16.msra.mxu0 0
    %1472 = vmatprep.subr.bf16.mxu0 0
    %1473 = vmatpush1.bf16.msra.mxu0 0
    %1474 = vmatprep.subr.bf16.mxu0 0
    %1475 = vmatpush1.bf16.msra.mxu0 0
    %1476 = vmatprep.subr.bf16.mxu0 0
    %1477 = vmatpush1.bf16.msra.mxu0 0
    %1478 = vmatprep.subr.bf16.mxu0 0
    %1479 = vmatpush1.bf16.msra.mxu0 0
    %1480 = vmatprep.mubr.bf16.mxu0 0
    %1481 = vmatmul.mubr.bf16.gmra.mrb[0].mxu0 %v1446
    %v1482 = vpop.f32.mrb[0].mxu0
    %v1483 = vadd.f32 0.0, %v1482
    %v1484 = vpop.f32.mrb[0].mxu0
    %v1485 = vpop.f32.mrb[0].mxu0
    %v1486 = vadd.f32 0.0, %v1485
    %v1487 = vpop.f32.mrb[0].mxu0
    %1488 = vdwg.mxu0
    %v1491 = vunpack.c.l.b16 %v1211
    %v1492 = vunpack.c.l.b16 %v1212
    %v1493 = vpack.c.b16 %v1492, %v1491
    %v1496 = vsel %vm106, %v1209, 0
    %1498 = vmatprep.subr.bf16.mxu0 0
    %1499 = vmatpush1.bf16.msra.mxu0 %v1493
    %1500 = vmatprep.subr.bf16.mxu0 0
    %1501 = vmatpush1.bf16.msra.mxu0 0
    %1502 = vmatprep.subr.bf16.mxu0 0
    %1503 = vmatpush1.bf16.msra.mxu0 0
    %1504 = vmatprep.subr.bf16.mxu0 0
    %1505 = vmatpush1.bf16.msra.mxu0 0
    %1506 = vmatprep.subr.bf16.mxu0 0
    %1507 = vmatpush1.bf16.msra.mxu0 0
    %1508 = vmatprep.subr.bf16.mxu0 0
    %1509 = vmatpush1.bf16.msra.mxu0 0
    %1510 = vmatprep.subr.bf16.mxu0 0
    %1511 = vmatpush1.bf16.msra.mxu0 0
    %1512 = vmatprep.subr.bf16.mxu0 0
    %1513 = vmatpush1.bf16.msra.mxu0 0
    %1514 = vmatprep.subr.bf16.mxu0 0
    %1515 = vmatpush1.bf16.msra.mxu0 0
    %1516 = vmatprep.subr.bf16.mxu0 0
    %1517 = vmatpush1.bf16.msra.mxu0 0
    %1518 = vmatprep.subr.bf16.mxu0 0
    %1519 = vmatpush1.bf16.msra.mxu0 0
    %1520 = vmatprep.subr.bf16.mxu0 0
    %1521 = vmatpush1.bf16.msra.mxu0 0
    %1522 = vmatprep.subr.bf16.mxu0 0
    %1523 = vmatpush1.bf16.msra.mxu0 0
    %1524 = vmatprep.subr.bf16.mxu0 0
    %1525 = vmatpush1.bf16.msra.mxu0 0
    %1526 = vmatprep.subr.bf16.mxu0 0
    %1527 = vmatpush1.bf16.msra.mxu0 0
    %1528 = vmatprep.subr.bf16.mxu0 0
    %1529 = vmatpush1.bf16.msra.mxu0 0
    %1530 = vmatprep.mubr.bf16.mxu0 0
    %1531 = vmatmul.mubr.bf16.gmra.mrb[0].mxu0 %v1496
    %v1532 = vpop.f32.mrb[0].mxu0
    %v1533 = vadd.f32 %v1483, %v1532
    %v1534 = vpop.f32.mrb[0].mxu0
    %v1535 = vpop.f32.mrb[0].mxu0
    %v1536 = vadd.f32 %v1486, %v1535
    %v1537 = vpop.f32.mrb[0].mxu0
    %1538 = vdwg.mxu0
    %v1539 = vlaneseq
    %v1540 = vshrl.u32 %v1539, 7
    %v1541 = vsub.s32 1, %v1540
    %v1542 = vrot.slane %v920, %v1541
    %v1543 = vadd.f32 %v1533, %v1542
    %v1544 = vadd.f32 %v1536, %v1542
    %v1545 = vadd.f32 %v917, %v1543
    %v1546 = vadd.f32 %v918, %v1544
    %v1547 = vsel %vm56, %v1545, 0.0
    %1548 = vadd.xlane.f32.xlu0 %v1547
    %v1549 = vpop.xlane.xlu0 %1548
    %v1550 = vsel %vm56, %v1546, 0.0
    %1551 = vadd.xlane.f32.xlu0 %v1550
    %v1552 = vpop.xlane.xlu0 %1551
    %v1553 = vmul.f32 %v1549, %v669
    %v1554 = vmul.f32 %v1552, %v669
    %v1555 = vsub.f32 %v1545, %v1553
    %v1556 = vsub.f32 %v1546, %v1554
    %v1557 = vmul.f32 %v1555, %v1555
    %v1558 = vmul.f32 %v1556, %v1556
    %v1559 = vsel %vm56, %v1557, 0.0
    %1560 = vadd.xlane.f32.xlu0 %v1559
    %v1561 = vpop.xlane.xlu0 %1560
    %v1562 = vsel %vm56, %v1558, 0.0
    %1563 = vadd.xlane.f32.xlu0 %v1562
    %v1564 = vpop.xlane.xlu0 %1563
    %v1565 = vmul.f32 %v1561, %v669
    %v1566 = vmul.f32 %v1564, %v669
    %v1567 = vadd.f32 %v1565, 1e-05
    %v1568 = vadd.f32 %v1566, 1e-05
    %v1569 = vrsqrt.pop %v1567
    %v1570 = vrsqrt.pop %v1568
    %v1571 = vmul.f32 %v1555, %v1569
    %v1572 = vmul.f32 %v1556, %v1570
    %v1573 = vlaneseq
    %v1574 = vshrl.u32 %v1573, 7
    %v1575 = vsub.s32 2, %v1574
    %v1576 = vrot.slane %v920, %v1575
    %v1577 = vmul.f32 %v1571, %v1576
    %v1578 = vmul.f32 %v1572, %v1576
    %v1579 = vlaneseq
    %v1580 = vshrl.u32 %v1579, 7
    %v1581 = vsub.s32 3, %v1580
    %v1582 = vrot.slane %v920, %v1581
    %v1583 = vadd.f32 %v1577, %v1582
    %v1584 = vadd.f32 %v1578, %v1582
    %v1585 = vpack.c.bf16 %v1584, %v1583
    %s1586 = scalar_lea.vmem %s4, 16
    %v1587 = vld [vmem:[%s1586] sm:$0xf]
    %v1588 = vld [vmem:[%s1586 + $0x4] sm:$0xf]
    %v1589 = vld [vmem:[%s1586 + $0x8] sm:$0xf]
    %v1590 = vld [vmem:[%s1586 + $0xc] sm:$0xf]
    %v1591 = vlaneseq
    %v1592 = vshrl.u32 %v1591, 7
    %v1593 = vsub.s32 4, %v1592
    %v1594 = vrot.slane %v920, %v1593
    %v1599 = vunpack.c.l.b16 %v1587
    %v1600 = vunpack.c.l.b16 %v1588
    %v1601 = vunpack.c.l.b16 %v1589
    %v1602 = vunpack.c.l.b16 %v1590
    %v1603 = vpack.c.b16 %v1600, %v1599
    %v1604 = vpack.c.b16 %v1602, %v1601
    %v1608 = vsel %vm56, %v1585, 0
    %1610 = vmatprep.subr.bf16.mxu0 0
    %1611 = vmatpush1.bf16.msra.mxu0 %v1603
    %1612 = vmatprep.subr.bf16.mxu0 0
    %1613 = vmatpush1.bf16.msra.mxu0 %v1604
    %1614 = vmatprep.subr.bf16.mxu0 0
    %1615 = vmatpush1.bf16.msra.mxu0 0
    %1616 = vmatprep.subr.bf16.mxu0 0
    %1617 = vmatpush1.bf16.msra.mxu0 0
    %1618 = vmatprep.subr.bf16.mxu0 0
    %1619 = vmatpush1.bf16.msra.mxu0 0
    %1620 = vmatprep.subr.bf16.mxu0 0
    %1621 = vmatpush1.bf16.msra.mxu0 0
    %1622 = vmatprep.subr.bf16.mxu0 0
    %1623 = vmatpush1.bf16.msra.mxu0 0
    %1624 = vmatprep.subr.bf16.mxu0 0
    %1625 = vmatpush1.bf16.msra.mxu0 0
    %1626 = vmatprep.subr.bf16.mxu0 0
    %1627 = vmatpush1.bf16.msra.mxu0 0
    %1628 = vmatprep.subr.bf16.mxu0 0
    %1629 = vmatpush1.bf16.msra.mxu0 0
    %1630 = vmatprep.subr.bf16.mxu0 0
    %1631 = vmatpush1.bf16.msra.mxu0 0
    %1632 = vmatprep.subr.bf16.mxu0 0
    %1633 = vmatpush1.bf16.msra.mxu0 0
    %1634 = vmatprep.subr.bf16.mxu0 0
    %1635 = vmatpush1.bf16.msra.mxu0 0
    %1636 = vmatprep.subr.bf16.mxu0 0
    %1637 = vmatpush1.bf16.msra.mxu0 0
    %1638 = vmatprep.subr.bf16.mxu0 0
    %1639 = vmatpush1.bf16.msra.mxu0 0
    %1640 = vmatprep.subr.bf16.mxu0 0
    %1641 = vmatpush1.bf16.msra.mxu0 0
    %1642 = vmatprep.mubr.bf16.mxu0 0
    %1643 = vmatmul.mubr.bf16.gmra.mrb[0].mxu0 %v1608
    %v1644 = vpop.f32.mrb[0].mxu0
    %v1645 = vadd.f32 %v1594, %v1644
    %v1646 = vpop.f32.mrb[0].mxu0
    %v1647 = vpop.f32.mrb[0].mxu0
    %v1648 = vadd.f32 %v1594, %v1647
    %v1649 = vpop.f32.mrb[0].mxu0
    %1650 = vdwg.mxu0
    %v1651 = vmax.f32 %v1645, 0.0
    %v1652 = vmax.f32 %v1648, 0.0
    %v1653 = vpack.c.bf16 %v1652, %v1651
    %s1654 = scalar_lea.vmem %s5, 64
    %v1655 = vld [vmem:[%s1654] sm:$0xf]
    %v1656 = vld [vmem:[%s1654 + $0x4] sm:$0xf]
    %v1657 = vld [vmem:[%s1654 + $0x8] sm:$0xf]
    %v1658 = vld [vmem:[%s1654 + $0xc] sm:$0xf]
    %v1659 = vld [vmem:[%s1654 + $0x10] sm:$0xf]
    %v1660 = vld [vmem:[%s1654 + $0x14] sm:$0xf]
    %v1661 = vld [vmem:[%s1654 + $0x18] sm:$0xf]
    %v1662 = vld [vmem:[%s1654 + $0x1c] sm:$0xf]
    %v1663 = vld [vmem:[%s1654 + $0x20] sm:$0xf]
    %v1664 = vld [vmem:[%s1654 + $0x24] sm:$0xf]
    %v1665 = vld [vmem:[%s1654 + $0x28] sm:$0xf]
    %v1666 = vld [vmem:[%s1654 + $0x2c] sm:$0xf]
    %v1667 = vld [vmem:[%s1654 + $0x30] sm:$0xf]
    %v1668 = vld [vmem:[%s1654 + $0x34] sm:$0xf]
    %v1669 = vld [vmem:[%s1654 + $0x38] sm:$0xf]
    %v1670 = vld [vmem:[%s1654 + $0x3c] sm:$0xf]
    %v1671 = vlaneseq
    %v1672 = vshrl.u32 %v1671, 7
    %v1673 = vsub.s32 5, %v1672
    %v1674 = vrot.slane %v920, %v1673
    %v1691 = vunpack.c.l.b16 %v1655
    %v1692 = vunpack.c.l.b16 %v1656
    %v1693 = vunpack.c.l.b16 %v1657
    %v1694 = vunpack.c.l.b16 %v1658
    %v1695 = vunpack.c.l.b16 %v1659
    %v1696 = vunpack.c.l.b16 %v1660
    %v1697 = vunpack.c.l.b16 %v1661
    %v1698 = vunpack.c.l.b16 %v1662
    %v1699 = vunpack.c.l.b16 %v1663
    %v1700 = vunpack.c.l.b16 %v1664
    %v1701 = vunpack.c.l.b16 %v1665
    %v1702 = vunpack.c.l.b16 %v1666
    %v1703 = vunpack.c.l.b16 %v1667
    %v1704 = vunpack.c.l.b16 %v1668
    %v1705 = vunpack.c.l.b16 %v1669
    %v1706 = vunpack.c.l.b16 %v1670
    %v1707 = vpack.c.b16 %v1692, %v1691
    %v1708 = vpack.c.b16 %v1694, %v1693
    %v1709 = vpack.c.b16 %v1696, %v1695
    %v1710 = vpack.c.b16 %v1698, %v1697
    %v1711 = vpack.c.b16 %v1700, %v1699
    %v1712 = vpack.c.b16 %v1702, %v1701
    %v1713 = vpack.c.b16 %v1704, %v1703
    %v1714 = vpack.c.b16 %v1706, %v1705
    %1723 = vmatprep.subr.bf16.mxu0 0
    %1724 = vmatpush1.bf16.msra.mxu0 %v1707
    %1725 = vmatprep.subr.bf16.mxu0 0
    %1726 = vmatpush1.bf16.msra.mxu0 %v1708
    %1727 = vmatprep.subr.bf16.mxu0 0
    %1728 = vmatpush1.bf16.msra.mxu0 %v1709
    %1729 = vmatprep.subr.bf16.mxu0 0
    %1730 = vmatpush1.bf16.msra.mxu0 %v1710
    %1731 = vmatprep.subr.bf16.mxu0 0
    %1732 = vmatpush1.bf16.msra.mxu0 %v1711
    %1733 = vmatprep.subr.bf16.mxu0 0
    %1734 = vmatpush1.bf16.msra.mxu0 %v1712
    %1735 = vmatprep.subr.bf16.mxu0 0
    %1736 = vmatpush1.bf16.msra.mxu0 %v1713
    %1737 = vmatprep.subr.bf16.mxu0 0
    %1738 = vmatpush1.bf16.msra.mxu0 %v1714
    %1739 = vmatprep.subr.bf16.mxu0 0
    %1740 = vmatpush1.bf16.msra.mxu0 0
    %1741 = vmatprep.subr.bf16.mxu0 0
    %1742 = vmatpush1.bf16.msra.mxu0 0
    %1743 = vmatprep.subr.bf16.mxu0 0
    %1744 = vmatpush1.bf16.msra.mxu0 0
    %1745 = vmatprep.subr.bf16.mxu0 0
    %1746 = vmatpush1.bf16.msra.mxu0 0
    %1747 = vmatprep.subr.bf16.mxu0 0
    %1748 = vmatpush1.bf16.msra.mxu0 0
    %1749 = vmatprep.subr.bf16.mxu0 0
    %1750 = vmatpush1.bf16.msra.mxu0 0
    %1751 = vmatprep.subr.bf16.mxu0 0
    %1752 = vmatpush1.bf16.msra.mxu0 0
    %1753 = vmatprep.subr.bf16.mxu0 0
    %1754 = vmatpush1.bf16.msra.mxu0 0
    %1755 = vmatprep.mubr.bf16.mxu0 0
    %1756 = vmatmul.mubr.bf16.gmra.mrb[0].mxu0 %v1653
    %v1757 = vpop.f32.mrb[0].mxu0
    %v1758 = vadd.f32 %v1674, %v1757
    %v1759 = vpop.f32.mrb[0].mxu0
    %v1760 = vpop.f32.mrb[0].mxu0
    %v1761 = vadd.f32 %v1674, %v1760
    %v1762 = vpop.f32.mrb[0].mxu0
    %1763 = vdwg.mxu0
    %v1764 = vadd.f32 %v1583, %v1758
    %v1765 = vadd.f32 %v1584, %v1761
    %v1766 = vsel %vm56, %v1764, 0.0
    %1767 = vadd.xlane.f32.xlu0 %v1766
    %v1768 = vpop.xlane.xlu0 %1767
    %v1769 = vsel %vm56, %v1765, 0.0
    %1770 = vadd.xlane.f32.xlu0 %v1769
    %v1771 = vpop.xlane.xlu0 %1770
    %v1772 = vmul.f32 %v1768, %v669
    %v1773 = vmul.f32 %v1771, %v669
    %v1774 = vsub.f32 %v1764, %v1772
    %v1775 = vsub.f32 %v1765, %v1773
    %v1776 = vmul.f32 %v1774, %v1774
    %v1777 = vmul.f32 %v1775, %v1775
    %v1778 = vsel %vm56, %v1776, 0.0
    %1779 = vadd.xlane.f32.xlu0 %v1778
    %v1780 = vpop.xlane.xlu0 %1779
    %v1781 = vsel %vm56, %v1777, 0.0
    %1782 = vadd.xlane.f32.xlu0 %v1781
    %v1783 = vpop.xlane.xlu0 %1782
    %v1784 = vmul.f32 %v1780, %v669
    %v1785 = vmul.f32 %v1783, %v669
    %v1786 = vadd.f32 %v1784, 1e-05
    %v1787 = vadd.f32 %v1785, 1e-05
    %v1788 = vrsqrt.pop %v1786
    %v1789 = vrsqrt.pop %v1787
    %v1790 = vmul.f32 %v1774, %v1788
    %v1791 = vmul.f32 %v1775, %v1789
    %v1792 = vlaneseq
    %v1793 = vshrl.u32 %v1792, 7
    %v1794 = vsub.s32 6, %v1793
    %v1795 = vrot.slane %v920, %v1794
    %v1796 = vmul.f32 %v1790, %v1795
    %v1797 = vmul.f32 %v1791, %v1795
    %v1798 = vlaneseq
    %v1799 = vshrl.u32 %v1798, 7
    %v1800 = vsub.s32 7, %v1799
    %v1801 = vrot.slane %v920, %v1800
    %v1802 = vadd.f32 %v1796, %v1801
    %v1803 = vadd.f32 %v1797, %v1801
    %1804 = vst.msk [vmem:[#allocation2] sm:$0xff] %vm56, %v1802
    %1805 = vst.msk [vmem:[#allocation2 + $0x8] sm:$0xff] %vm56, %v1803
    // Predicated region
    $region30: #{transformer_classifier_forward.1} parent=1 // pred_check
      _
    $region31: #{transformer_classifier_forward.1} parent=1 // pred_check_branch
      %1807 = sbr.rel (0) target = $region33
    $region32: #{transformer_classifier_forward.1} parent=1 // pred_region
      %s1809 = ssub.s32 256, 256
      %1810 = vsyncadd [#allocation3], %s1809
      %s1811 = sshll.u32 [#allocation2], 4
      %s1812 = int_to_ptr.vmem [resolvable:$true] %s1811
      %1817 = dma.vmem_to_hbm [thread:$0]  %s1812, 256, %s7, [#allocation3], 128, 128, 8
    $region33: #{transformer_classifier_forward.1} parent=1 // pred_fallthru
      _
    // Predicated region
    $region34: #{transformer_classifier_forward.1} parent=1 // pred_check
      _
    $region35: #{transformer_classifier_forward.1} parent=1 // pred_check_branch
      %1819 = sbr.rel (0) target = $region37
    $region36: #{transformer_classifier_forward.1} parent=1 // pred_region
      %1820 = dma.done [#allocation3], 256
    $region37: #{transformer_classifier_forward.1} parent=1 // pred_fallthru
      _
    %1821 = vsyncpa [#allocation3], 1

</llo_original>
